<compile_context>
chip_gen: v6e
topology: v6e:2x2x1
jax: 0.10.0
libtpu: 0.0.40
codegen_flags: <defaults>
</compile_context>

<pallas_src>
import functools

import jax
import jax.numpy as jnp
from jax.experimental import pallas as pl
from jax.experimental.pallas import tpu as pltpu

TILE_N = 256                       # row / contraction tile over nodes (256-aligned for v6e/v7x MXU)
LANE = 128                         # lane padding for feature dims
VMEM_LIMIT_BYTES = 32 * 1024 * 1024


def _round_up(x, m):
    return ((x + m - 1) // m) * m


# ----------------------------------------------------------------------------
# Pallas kernels
# ----------------------------------------------------------------------------
def xw_kernel(x_ref, wt_ref, o_ref):
    """Row-tiled feature transform: O = X_tile @ W^T (bf16 in, f32 acc, bf16 out)."""
    o_ref[...] = jnp.dot(
        x_ref[...].astype(jnp.bfloat16), wt_ref[...],
        preferred_element_type=jnp.float32,
    ).astype(o_ref.dtype)


def agg_kernel(a_ref, xw_ref, b_ref, o_ref, acc_ref):
    """Tiled aggregation: O = A_hat @ XW + b with f32 k-reduction accumulator."""
    k = pl.program_id(1)

    @pl.when(k == 0)
    def _():
        acc_ref[...] = jnp.zeros_like(acc_ref)

    acc_ref[...] += jnp.dot(a_ref[...], xw_ref[...],
                            preferred_element_type=jnp.float32)

    @pl.when(k == pl.num_programs(1) - 1)
    def _():
        o_ref[...] = (acc_ref[...] + b_ref[...]).astype(o_ref.dtype)


def head_xw_kernel(h_ref, head_ref, wt_ref, z_ref, zw_ref):
    """Fused: z = h2 @ head1 (emitted) and zW3 = z @ W3^T for the next layer."""
    z = jnp.dot(h_ref[...].astype(jnp.bfloat16), head_ref[...],
                preferred_element_type=jnp.float32)
    z_ref[...] = z.astype(z_ref.dtype)
    zw_ref[...] = jnp.dot(z.astype(jnp.bfloat16), wt_ref[...],
                          preferred_element_type=jnp.float32).astype(zw_ref.dtype)


# ----------------------------------------------------------------------------
# pallas_call wrappers
# ----------------------------------------------------------------------------
def feature_transform(x, wt, *, tm=TILE_N):
    """XW = X @ W^T, X is (n_pad, f_pad), wt is (f_pad, h_pad) bf16."""
    n_pad, f_pad = x.shape
    h_pad = wt.shape[1]
    return pl.pallas_call(
        xw_kernel,
        out_shape=jax.ShapeDtypeStruct((n_pad, h_pad), jnp.bfloat16),
        grid_spec=pltpu.PrefetchScalarGridSpec(
            num_scalar_prefetch=0,
            grid=(n_pad // tm,),
            in_specs=[pl.BlockSpec((tm, f_pad), lambda i: (i, 0)),
                      pl.BlockSpec((f_pad, h_pad), lambda i: (0, 0))],
            out_specs=pl.BlockSpec((tm, h_pad), lambda i: (i, 0))),
        compiler_params=pltpu.CompilerParams(
            dimension_semantics=("parallel",),
            vmem_limit_bytes=VMEM_LIMIT_BYTES),
        cost_estimate=pl.CostEstimate(
            flops=2 * n_pad * f_pad * h_pad,
            transcendentals=0,
            bytes_accessed=2 * (n_pad * f_pad + f_pad * h_pad + n_pad * h_pad)),
    )(x, wt)


def aggregate(a_hat, xw, bias, *, tm=TILE_N, tk=TILE_N):
    """H = A_hat @ XW + bias; a_hat (n_pad, n_pad) bf16, xw (n_pad, h_pad) bf16."""
    n_pad = a_hat.shape[0]
    h_pad = xw.shape[1]
    return pl.pallas_call(
        agg_kernel,
        out_shape=jax.ShapeDtypeStruct((n_pad, h_pad), jnp.float32),
        grid_spec=pltpu.PrefetchScalarGridSpec(
            num_scalar_prefetch=0,
            grid=(n_pad // tm, n_pad // tk),
            in_specs=[pl.BlockSpec((tm, tk), lambda i, k: (i, k)),
                      pl.BlockSpec((tk, h_pad), lambda i, k: (k, 0)),
                      pl.BlockSpec((1, h_pad), lambda i, k: (0, 0))],
            out_specs=pl.BlockSpec((tm, h_pad), lambda i, k: (i, 0)),
            scratch_shapes=[pltpu.VMEM((tm, h_pad), jnp.float32)]),
        compiler_params=pltpu.CompilerParams(
            dimension_semantics=("parallel", "arbitrary"),
            vmem_limit_bytes=VMEM_LIMIT_BYTES),
        cost_estimate=pl.CostEstimate(
            flops=2 * n_pad * n_pad * h_pad,
            transcendentals=0,
            bytes_accessed=2 * n_pad * n_pad + 2 * n_pad * h_pad
            + 4 * n_pad * h_pad),
    )(a_hat, xw, bias)


def head_and_transform(h2, head1, wt3, *, tm=TILE_N):
    """Returns (z, zW3) from a single fused, row-tiled pass over h2."""
    n_pad, out_pad = h2.shape
    hid_pad = wt3.shape[1]
    return pl.pallas_call(
        head_xw_kernel,
        out_shape=(jax.ShapeDtypeStruct((n_pad, out_pad), jnp.float32),
                   jax.ShapeDtypeStruct((n_pad, hid_pad), jnp.bfloat16)),
        grid_spec=pltpu.PrefetchScalarGridSpec(
            num_scalar_prefetch=0,
            grid=(n_pad // tm,),
            in_specs=[pl.BlockSpec((tm, out_pad), lambda i: (i, 0)),
                      pl.BlockSpec((out_pad, out_pad), lambda i: (0, 0)),
                      pl.BlockSpec((out_pad, hid_pad), lambda i: (0, 0))],
            out_specs=(pl.BlockSpec((tm, out_pad), lambda i: (i, 0)),
                       pl.BlockSpec((tm, hid_pad), lambda i: (i, 0)))),
        compiler_params=pltpu.CompilerParams(
            dimension_semantics=("parallel",),
            vmem_limit_bytes=VMEM_LIMIT_BYTES),
        cost_estimate=pl.CostEstimate(
            flops=2 * n_pad * out_pad * (out_pad + hid_pad),
            transcendentals=0,
            bytes_accessed=4 * n_pad * out_pad + 2 * n_pad * hid_pad),
    )(h2, head1, wt3)


# ----------------------------------------------------------------------------
# Plain-JAX glue: graph preprocessing, parameter prep, forward orchestration
# ----------------------------------------------------------------------------
def normalized_adjacency(edge_index, num_nodes):
    """Dense message-passing matrix  D^-1/2 (A' + I_remaining) D^-1/2  (f32)."""
    src, dst = edge_index[0], edge_index[1]
    a = jnp.zeros((num_nodes, num_nodes), jnp.float32)
    a = a.at[dst, src].add(1.0)                       # scatter-add: duplicates accumulate
    diag = jnp.diagonal(a)                            # add_remaining_self_loops semantics
    a = a + jnp.diag(jnp.where(diag > 0.0, 0.0, 1.0))
    deg = jnp.sum(a, axis=1)
    d_inv_sqrt = jnp.where(deg > 0.0, jax.lax.rsqrt(deg), 0.0)
    return a * d_inv_sqrt[:, None] * d_inv_sqrt[None, :]


def pad_adjacency(a_hat, n_pad):
    n = a_hat.shape[0]
    return jnp.pad(a_hat, ((0, n_pad - n), (0, n_pad - n))).astype(jnp.bfloat16)


def xavier_uniform(key, shape):
    fan_out, fan_in = shape
    limit = jnp.sqrt(6.0 / (fan_in + fan_out))
    return jax.random.uniform(key, shape, jnp.float32, -limit, limit)


def init_gae_params(key, in_dim, num_hidden, out_dim):
    k1, k2, k3 = jax.random.split(key, 3)
    return {
        # torch layout: lin.weight is (out_features, in_features)
        "w1": xavier_uniform(k1, (num_hidden, in_dim)),
        "b1": jnp.zeros((num_hidden,), jnp.float32),
        "w2": xavier_uniform(k2, (out_dim, num_hidden)),
        "b2": jnp.zeros((out_dim,), jnp.float32),
        # conv3 / conv4 weights are tied (transposed) in forward(); only biases free.
        "b3": jnp.zeros((num_hidden,), jnp.float32),
        "b4": jnp.zeros((in_dim,), jnp.float32),
        "head1": xavier_uniform(k3, (out_dim, out_dim)),
    }


def prepare_params(params, dims):
    """Done once: transpose to (in, out), lane-pad to 128 multiples, cast bf16."""
    in_dim, num_hidden, out_dim = dims
    in_p, hid_p, out_p = (_round_up(d, LANE) for d in dims)

    def pad2(w, rows, cols):
        return jnp.pad(w, ((0, rows - w.shape[0]), (0, cols - w.shape[1])))

    def padb(b, p):
        return jnp.pad(b, (0, p - b.shape[0])).reshape(1, p).astype(jnp.float32)

    return {
        "wt1": pad2(params["w1"].T, in_p, hid_p).astype(jnp.bfloat16),
        "wt2": pad2(params["w2"].T, hid_p, out_p).astype(jnp.bfloat16),
        # weight tying: conv3.W = conv2.W^T  ->  W3^T = conv2.W (torch layout)
        "wt3": pad2(params["w2"], out_p, hid_p).astype(jnp.bfloat16),
        # weight tying: conv4.W = conv1.W^T  ->  W4^T = conv1.W (torch layout)
        "wt4": pad2(params["w1"], hid_p, in_p).astype(jnp.bfloat16),
        "head1": pad2(params["head1"], out_p, out_p).astype(jnp.bfloat16),
        "b1": padb(params["b1"], hid_p),
        "b2": padb(params["b2"], out_p),
        "b3": padb(params["b3"], hid_p),
        "b4": padb(params["b4"], in_p),
    }


def gae_forward(prepped, a_hat_pad, features, *, num_nodes, dims):
    in_dim, num_hidden, out_dim = dims
    n_pad = a_hat_pad.shape[0]
    in_p = prepped["wt1"].shape[0]

    x = jnp.pad(features.astype(jnp.float32),
                ((0, n_pad - num_nodes), (0, in_p - in_dim)))

    # layer 1: h1 = A_hat @ (X W1^T) + b1
    h1 = aggregate(a_hat_pad, feature_transform(x, prepped["wt1"]), prepped["b1"])
    # layer 2: h2 = A_hat @ (h1 W2^T) + b2
    h2 = aggregate(a_hat_pad, feature_transform(h1, prepped["wt2"]), prepped["b2"])
    # fused head: z = h2 @ head1  (emitted)  and  zW3 = z @ W3^T  (for layer 3)
    z, zw3 = head_and_transform(h2, prepped["head1"], prepped["wt3"])
    # layer 3: h3 = A_hat @ zW3 + b3
    h3 = aggregate(a_hat_pad, zw3, prepped["b3"])
    # layer 4: h4 = A_hat @ (h3 W4^T) + b4
    h4 = aggregate(a_hat_pad, feature_transform(h3, prepped["wt4"]), prepped["b4"])

    return (z[:num_nodes, :out_dim],
            h2[:num_nodes, :out_dim],
            h4[:num_nodes, :in_dim])


def gae_reference(params, a_hat, x):
    """Pure-JAX f32 reference (same semantics, no padding / bf16)."""
    def gcn(a, x, w_torch, b):
        return a @ (x @ w_torch.T) + b

    h1 = gcn(a_hat, x, params["w1"], params["b1"])
    h2 = gcn(a_hat, h1, params["w2"], params["b2"])
    z = h2 @ params["head1"]
    h3 = gcn(a_hat, z, params["w2"].T, params["b3"])
    h4 = gcn(a_hat, h3, params["w1"].T, params["b4"])
    return z, h2, h4


# ----------------------------------------------------------------------------
if __name__ == "__main__":
    # small synthetic problem
    N = 8            # nodes
    IN_DIM = 16
    NUM_HIDDEN = 32
    OUT_DIM = 8
    E = 16           # edges
    DIMS = (IN_DIM, NUM_HIDDEN, OUT_DIM)

    key = jax.random.PRNGKey(0)
    k_feat, k_edge, k_param = jax.random.split(key, 3)

    features = jax.random.normal(k_feat, (N, IN_DIM), jnp.float32)
    edge_index = jax.random.randint(k_edge, (2, E), 0, N, jnp.int32)
    params = init_gae_params(k_param, IN_DIM, NUM_HIDDEN, OUT_DIM)

    # one-time graph / parameter preprocessing (hoisted out of the hot forward)
    n_pad = _round_up(N, TILE_N)
    a_hat_f32 = normalized_adjacency(edge_index, N)
    a_hat_pad = pad_adjacency(a_hat_f32, n_pad)
    prepped = prepare_params(params, DIMS)

    forward = jax.jit(functools.partial(gae_forward, num_nodes=N, dims=DIMS))
    z, h2, h4 = forward(prepped, a_hat_pad, features)
    jax.block_until_ready((z, h2, h4))

    assert z.shape == (N, OUT_DIM)
    assert h2.shape == (N, OUT_DIM)
    assert h4.shape == (N, IN_DIM)

    # correctness vs pure-JAX f32 reference (loose tolerance for bf16 operands)
    z_ref, h2_ref, h4_ref = gae_reference(params, a_hat_f32, features)
    for name, got, ref in (("z", z, z_ref), ("h2", h2, h2_ref), ("h4", h4, h4_ref)):
        scale = float(jnp.max(jnp.abs(ref))) + 1.0
        err = float(jnp.max(jnp.abs(got - ref)))
        assert err < 5e-2 * scale, f"{name}: max abs err {err} (scale {scale})"

    print("KERNEL_OK")
</pallas_src>

<mosaic_0001>
module attributes {stable_mosaic.version = 11 : i64} {
  func.func @agg_kernel(%arg0: i32, %arg1: i32, %arg2: memref<256x256xbf16, #tpu.memory_space<vmem>>, %arg3: memref<256x128xbf16, #tpu.memory_space<vmem>>, %arg4: memref<1x128xf32, #tpu.memory_space<vmem>>, %arg5: memref<256x128xf32, #tpu.memory_space<vmem>>, %arg6: memref<256x128xf32, #tpu.memory_space<vmem>>) attributes {dimension_semantics = [#tpu.dimension_semantics<parallel>, #tpu.dimension_semantics<arbitrary>], iteration_bounds = array<i64: 1, 1>, scalar_prefetch = 0 : i64, scratch_operands = 1 : i64, tpu.core_type = #tpu.core_type<tc>, window_params = [{transform_indices = @transform_0, window_bounds = array<i64: 256, 256>}, {transform_indices = @transform_1, window_bounds = array<i64: 256, 128>}, {pipeline_mode = #tpu.pipeline_mode<synchronous>, transform_indices = @transform_2, window_bounds = array<i64: 1, 128>}, {transform_indices = @transform_3, window_bounds = array<i64: 256, 128>}]} {
    %c0_i32 = arith.constant 0 : i32
    %0 = arith.cmpi eq, %arg1, %c0_i32 : i32
    %1 = arith.extui %0 : i1 to i32
    %c0_i32_0 = arith.constant 0 : i32
    %2 = arith.cmpi ne, %1, %c0_i32_0 : i32
    scf.if %2 {
      %cst_10 = arith.constant 0.000000e+00 : f32
      %12 = vector.broadcast %cst_10 : f32 to vector<256x128xf32>
      %c0_11 = arith.constant 0 : index
      %c0_12 = arith.constant 0 : index
      %13 = vector.load %arg6[%c0_11, %c0_12] : memref<256x128xf32, #tpu.memory_space<vmem>>, vector<256x128xf32>
      tpu.vector_store %arg6[%c0_11, %c0_12], %12 {strides = array<i32>} : memref<256x128xf32, #tpu.memory_space<vmem>>, vector<256x128xf32>,
    } else {
    }
    %c0 = arith.constant 0 : index
    %c0_1 = arith.constant 0 : index
    %3 = vector.load %arg6[%c0, %c0_1] : memref<256x128xf32, #tpu.memory_space<vmem>>, vector<256x128xf32>
    %c0_2 = arith.constant 0 : index
    %c0_3 = arith.constant 0 : index
    %4 = vector.load %arg2[%c0_2, %c0_3] : memref<256x256xbf16, #tpu.memory_space<vmem>>, vector<256x256xbf16>
    %c0_4 = arith.constant 0 : index
    %c0_5 = arith.constant 0 : index
    %5 = vector.load %arg3[%c0_4, %c0_5] : memref<256x128xbf16, #tpu.memory_space<vmem>>, vector<256x128xbf16>
    %cst = arith.constant dense<0.000000e+00> : vector<256x128xf32>
    %6 = tpu.matmul %4, %5, %cst {dimension_numbers = #tpu.dot_dimension_numbers<[1], [0], [0], [1], [0, 0, 1, 1], [], []>} : vector<256x256xbf16>, vector<256x128xbf16>, vector<256x128xf32> -> vector<256x128xf32>
    %7 = arith.addf %3, %6 : vector<256x128xf32>
    %c0_6 = arith.constant 0 : index
    %c0_7 = arith.constant 0 : index
    %8 = vector.load %arg6[%c0_6, %c0_7] : memref<256x128xf32, #tpu.memory_space<vmem>>, vector<256x128xf32>
    tpu.vector_store %arg6[%c0_6, %c0_7], %7 {strides = array<i32>} : memref<256x128xf32, #tpu.memory_space<vmem>>, vector<256x128xf32>,
    %c0_i32_8 = arith.constant 0 : i32
    %9 = arith.cmpi eq, %arg1, %c0_i32_8 : i32
    %10 = arith.extui %9 : i1 to i32
    %c0_i32_9 = arith.constant 0 : i32
    %11 = arith.cmpi ne, %10, %c0_i32_9 : i32
    scf.if %11 {
      %c0_10 = arith.constant 0 : index
      %c0_11 = arith.constant 0 : index
      %12 = vector.load %arg6[%c0_10, %c0_11] : memref<256x128xf32, #tpu.memory_space<vmem>>, vector<256x128xf32>
      %c0_12 = arith.constant 0 : index
      %c0_13 = arith.constant 0 : index
      %13 = vector.load %arg4[%c0_12, %c0_13] : memref<1x128xf32, #tpu.memory_space<vmem>>, vector<1x128xf32>
      %14 = vector.broadcast %13 : vector<1x128xf32> to vector<256x128xf32>
      %15 = arith.addf %12, %14 : vector<256x128xf32>
      %c0_14 = arith.constant 0 : index
      %c0_15 = arith.constant 0 : index
      %16 = vector.load %arg5[%c0_14, %c0_15] : memref<256x128xf32, #tpu.memory_space<vmem>>, vector<256x128xf32>
      tpu.vector_store %arg5[%c0_14, %c0_15], %15 {strides = array<i32>} : memref<256x128xf32, #tpu.memory_space<vmem>>, vector<256x128xf32>,
    } else {
    }
    return
  }
  func.func @transform_0(%arg0: i32, %arg1: i32) -> (i32, i32) {
    %c0_i32 = arith.constant 0 : i32
    return %arg0, %arg1 : i32, i32
  }
  func.func @transform_1(%arg0: i32, %arg1: i32) -> (i32, i32) {
    %c0_i32 = arith.constant 0 : i32
    %c0_i32_0 = arith.constant 0 : i32
    return %arg1, %c0_i32 : i32, i32
  }
  func.func @transform_2(%arg0: i32, %arg1: i32) -> (i32, i32) {
    %c0_i32 = arith.constant 0 : i32
    %c0_i32_0 = arith.constant 0 : i32
    %c0_i32_1 = arith.constant 0 : i32
    return %c0_i32, %c0_i32_0 : i32, i32
  }
  func.func @transform_3(%arg0: i32, %arg1: i32) -> (i32, i32) {
    %c0_i32 = arith.constant 0 : i32
    %c0_i32_0 = arith.constant 0 : i32
    return %arg0, %c0_i32 : i32, i32
  }
}

module attributes {stable_mosaic.version = 11 : i64} {
  func.func @xw_kernel(%arg0: i32, %arg1: memref<256x128xf32, #tpu.memory_space<vmem>>, %arg2: memref<128x128xbf16, #tpu.memory_space<vmem>>, %arg3: memref<256x128xbf16, #tpu.memory_space<vmem>>) attributes {dimension_semantics = [#tpu.dimension_semantics<parallel>], iteration_bounds = array<i64: 1>, scalar_prefetch = 0 : i64, scratch_operands = 0 : i64, tpu.core_type = #tpu.core_type<tc>, window_params = [{transform_indices = @transform_0, window_bounds = array<i64: 256, 128>}, {pipeline_mode = #tpu.pipeline_mode<synchronous>, transform_indices = @transform_1, window_bounds = array<i64: 128, 128>}, {transform_indices = @transform_2, window_bounds = array<i64: 256, 128>}]} {
    %c0 = arith.constant 0 : index
    %c0_0 = arith.constant 0 : index
    %0 = vector.load %arg1[%c0, %c0_0] : memref<256x128xf32, #tpu.memory_space<vmem>>, vector<256x128xf32>
    %1 = arith.truncf %0 : vector<256x128xf32> to vector<256x128xbf16>
    %c0_1 = arith.constant 0 : index
    %c0_2 = arith.constant 0 : index
    %2 = vector.load %arg2[%c0_1, %c0_2] : memref<128x128xbf16, #tpu.memory_space<vmem>>, vector<128x128xbf16>
    %cst = arith.constant dense<0.000000e+00> : vector<256x128xf32>
    %3 = tpu.matmul %1, %2, %cst {dimension_numbers = #tpu.dot_dimension_numbers<[1], [0], [0], [1], [0, 0, 1, 1], [], []>} : vector<256x128xbf16>, vector<128x128xbf16>, vector<256x128xf32> -> vector<256x128xf32>
    %4 = arith.truncf %3 : vector<256x128xf32> to vector<256x128xbf16>
    %c0_3 = arith.constant 0 : index
    %c0_4 = arith.constant 0 : index
    %5 = vector.load %arg3[%c0_3, %c0_4] : memref<256x128xbf16, #tpu.memory_space<vmem>>, vector<256x128xbf16>
    tpu.vector_store %arg3[%c0_3, %c0_4], %4 {strides = array<i32>} : memref<256x128xbf16, #tpu.memory_space<vmem>>, vector<256x128xbf16>,
    return
  }
  func.func @transform_0(%arg0: i32) -> (i32, i32) {
    %c0_i32 = arith.constant 0 : i32
    %c0_i32_0 = arith.constant 0 : i32
    return %arg0, %c0_i32 : i32, i32
  }
  func.func @transform_1(%arg0: i32) -> (i32, i32) {
    %c0_i32 = arith.constant 0 : i32
    %c0_i32_0 = arith.constant 0 : i32
    %c0_i32_1 = arith.constant 0 : i32
    return %c0_i32, %c0_i32_0 : i32, i32
  }
  func.func @transform_2(%arg0: i32) -> (i32, i32) {
    %c0_i32 = arith.constant 0 : i32
    %c0_i32_0 = arith.constant 0 : i32
    return %arg0, %c0_i32 : i32, i32
  }
}

module attributes {stable_mosaic.version = 11 : i64} {
  func.func @head_xw_kernel(%arg0: i32, %arg1: memref<256x128xf32, #tpu.memory_space<vmem>>, %arg2: memref<128x128xbf16, #tpu.memory_space<vmem>>, %arg3: memref<128x128xbf16, #tpu.memory_space<vmem>>, %arg4: memref<256x128xf32, #tpu.memory_space<vmem>>, %arg5: memref<256x128xbf16, #tpu.memory_space<vmem>>) attributes {dimension_semantics = [#tpu.dimension_semantics<parallel>], iteration_bounds = array<i64: 1>, scalar_prefetch = 0 : i64, scratch_operands = 0 : i64, tpu.core_type = #tpu.core_type<tc>, window_params = [{transform_indices = @transform_0, window_bounds = array<i64: 256, 128>}, {pipeline_mode = #tpu.pipeline_mode<synchronous>, transform_indices = @transform_1, window_bounds = array<i64: 128, 128>}, {pipeline_mode = #tpu.pipeline_mode<synchronous>, transform_indices = @transform_2, window_bounds = array<i64: 128, 128>}, {transform_indices = @transform_3, window_bounds = array<i64: 256, 128>}, {transform_indices = @transform_4, window_bounds = array<i64: 256, 128>}]} {
    %c0 = arith.constant 0 : index
    %c0_0 = arith.constant 0 : index
    %0 = vector.load %arg1[%c0, %c0_0] : memref<256x128xf32, #tpu.memory_space<vmem>>, vector<256x128xf32>
    %1 = arith.truncf %0 : vector<256x128xf32> to vector<256x128xbf16>
    %c0_1 = arith.constant 0 : index
    %c0_2 = arith.constant 0 : index
    %2 = vector.load %arg2[%c0_1, %c0_2] : memref<128x128xbf16, #tpu.memory_space<vmem>>, vector<128x128xbf16>
    %cst = arith.constant dense<0.000000e+00> : vector<256x128xf32>
    %3 = tpu.matmul %1, %2, %cst {dimension_numbers = #tpu.dot_dimension_numbers<[1], [0], [0], [1], [0, 0, 1, 1], [], []>} : vector<256x128xbf16>, vector<128x128xbf16>, vector<256x128xf32> -> vector<256x128xf32>
    %c0_3 = arith.constant 0 : index
    %c0_4 = arith.constant 0 : index
    %4 = vector.load %arg4[%c0_3, %c0_4] : memref<256x128xf32, #tpu.memory_space<vmem>>, vector<256x128xf32>
    tpu.vector_store %arg4[%c0_3, %c0_4], %3 {strides = array<i32>} : memref<256x128xf32, #tpu.memory_space<vmem>>, vector<256x128xf32>,
    %5 = arith.truncf %3 : vector<256x128xf32> to vector<256x128xbf16>
    %c0_5 = arith.constant 0 : index
    %c0_6 = arith.constant 0 : index
    %6 = vector.load %arg3[%c0_5, %c0_6] : memref<128x128xbf16, #tpu.memory_space<vmem>>, vector<128x128xbf16>
    %cst_7 = arith.constant dense<0.000000e+00> : vector<256x128xf32>
    %7 = tpu.matmul %5, %6, %cst_7 {dimension_numbers = #tpu.dot_dimension_numbers<[1], [0], [0], [1], [0, 0, 1, 1], [], []>} : vector<256x128xbf16>, vector<128x128xbf16>, vector<256x128xf32> -> vector<256x128xf32>
    %8 = arith.truncf %7 : vector<256x128xf32> to vector<256x128xbf16>
    %c0_8 = arith.constant 0 : index
    %c0_9 = arith.constant 0 : index
    %9 = vector.load %arg5[%c0_8, %c0_9] : memref<256x128xbf16, #tpu.memory_space<vmem>>, vector<256x128xbf16>
    tpu.vector_store %arg5[%c0_8, %c0_9], %8 {strides = array<i32>} : memref<256x128xbf16, #tpu.memory_space<vmem>>, vector<256x128xbf16>,
    return
  }
  func.func @transform_0(%arg0: i32) -> (i32, i32) {
    %c0_i32 = arith.constant 0 : i32
    %c0_i32_0 = arith.constant 0 : i32
    return %arg0, %c0_i32 : i32, i32
  }
  func.func @transform_1(%arg0: i32) -> (i32, i32) {
    %c0_i32 = arith.constant 0 : i32
    %c0_i32_0 = arith.constant 0 : i32
    %c0_i32_1 = arith.constant 0 : i32
    return %c0_i32, %c0_i32_0 : i32, i32
  }
  func.func @transform_2(%arg0: i32) -> (i32, i32) {
    %c0_i32 = arith.constant 0 : i32
    %c0_i32_0 = arith.constant 0 : i32
    %c0_i32_1 = arith.constant 0 : i32
    return %c0_i32, %c0_i32_0 : i32, i32
  }
  func.func @transform_3(%arg0: i32) -> (i32, i32) {
    %c0_i32 = arith.constant 0 : i32
    %c0_i32_0 = arith.constant 0 : i32
    return %arg0, %c0_i32 : i32, i32
  }
  func.func @transform_4(%arg0: i32) -> (i32, i32) {
    %c0_i32 = arith.constant 0 : i32
    %c0_i32_0 = arith.constant 0 : i32
    return %arg0, %c0_i32 : i32, i32
  }
}

</mosaic_0001>

<llo_original>
// kernel: gae_forward.8
$region0: #{gae_forward.8}
  #allocation0 [shape = 'u32[]', space=smem, size = 0x4, offset = 0x4, fixed_abs, tag = 'smem constant byte address 0x4 - core index']
  #allocation1 [shape = 'u32[144,128]{1,0:T(1,128)}', space=vmem, size = 0x12000, scoped, tag = 'internal scratch']
  %s0 = inlined_call_operand.vmem [shape: f32[256,128], index: 0, kind: input, shape index: {}]
  %s1 = inlined_call_operand.vmem [shape: bf16[128,128], index: 1, kind: input, shape index: {}]
  %s2 = inlined_call_operand.vmem [shape: bf16[256,128], index: 2, kind: output, shape index: {}]
  %s3 = sld [smem:[#allocation0]]
  $region18: #{gae_forward.8} parent=0
    _
  %s5 = ssub.s32 1, %s3
  %s6 = scalar_select 0, %s5, %s3
  // Predicated region
  $region2: #{gae_forward.8} parent=0 // pred_check
    _
  $region3: #{gae_forward.8} parent=0 // pred_check_branch
    %8 = sbr.rel (0) target = $region5
  $region4: #{gae_forward.8} parent=0 // pred_region
    _
  $region5: #{gae_forward.8} parent=0 // pred_fallthru
    _
  // Predicated region
  $region6: #{gae_forward.8} parent=0 // pred_check
    _
  $region7: #{gae_forward.8} parent=0 // pred_check_branch
    %10 = sbr.rel (0) target = $region9
  $region8: #{gae_forward.8} parent=0 // pred_region
    _
  $region9: #{gae_forward.8} parent=0 // pred_fallthru
    _
  %v12 = vld [vmem:[%s0] sm:$0xff]
  %v13 = vld [vmem:[%s0 + $0x8] sm:$0xff]
  %v14 = vld [vmem:[%s0 + $0x10] sm:$0xff]
  %v15 = vld [vmem:[%s0 + $0x18] sm:$0xff]
  %v16 = vld [vmem:[%s0 + $0x20] sm:$0xff]
  %v17 = vld [vmem:[%s0 + $0x28] sm:$0xff]
  %v18 = vld [vmem:[%s0 + $0x30] sm:$0xff]
  %v19 = vld [vmem:[%s0 + $0x38] sm:$0xff]
  %v20 = vld [vmem:[%s0 + $0x40] sm:$0xff]
  %v21 = vld [vmem:[%s0 + $0x48] sm:$0xff]
  %v22 = vld [vmem:[%s0 + $0x50] sm:$0xff]
  %v23 = vld [vmem:[%s0 + $0x58] sm:$0xff]
  %v24 = vld [vmem:[%s0 + $0x60] sm:$0xff]
  %v25 = vld [vmem:[%s0 + $0x68] sm:$0xff]
  %v26 = vld [vmem:[%s0 + $0x70] sm:$0xff]
  %v27 = vld [vmem:[%s0 + $0x78] sm:$0xff]
  %v28 = vld [vmem:[%s0 + $0x80] sm:$0xff]
  %v29 = vld [vmem:[%s0 + $0x88] sm:$0xff]
  %v30 = vld [vmem:[%s0 + $0x90] sm:$0xff]
  %v31 = vld [vmem:[%s0 + $0x98] sm:$0xff]
  %v32 = vld [vmem:[%s0 + $0xa0] sm:$0xff]
  %v33 = vld [vmem:[%s0 + $0xa8] sm:$0xff]
  %v34 = vld [vmem:[%s0 + $0xb0] sm:$0xff]
  %v35 = vld [vmem:[%s0 + $0xb8] sm:$0xff]
  %v36 = vld [vmem:[%s0 + $0xc0] sm:$0xff]
  %v37 = vld [vmem:[%s0 + $0xc8] sm:$0xff]
  %v38 = vld [vmem:[%s0 + $0xd0] sm:$0xff]
  %v39 = vld [vmem:[%s0 + $0xd8] sm:$0xff]
  %v40 = vld [vmem:[%s0 + $0xe0] sm:$0xff]
  %v41 = vld [vmem:[%s0 + $0xe8] sm:$0xff]
  %v42 = vld [vmem:[%s0 + $0xf0] sm:$0xff]
  %v43 = vld [vmem:[%s0 + $0xf8] sm:$0xff]
  %v44 = vpack.c.bf16 %v13, %v12
  %v45 = vpack.c.bf16 %v15, %v14
  %v46 = vpack.c.bf16 %v17, %v16
  %v47 = vpack.c.bf16 %v19, %v18
  %v48 = vpack.c.bf16 %v21, %v20
  %v49 = vpack.c.bf16 %v23, %v22
  %v50 = vpack.c.bf16 %v25, %v24
  %v51 = vpack.c.bf16 %v27, %v26
  %v52 = vpack.c.bf16 %v29, %v28
  %v53 = vpack.c.bf16 %v31, %v30
  %v54 = vpack.c.bf16 %v33, %v32
  %v55 = vpack.c.bf16 %v35, %v34
  %v56 = vpack.c.bf16 %v37, %v36
  %v57 = vpack.c.bf16 %v39, %v38
  %v58 = vpack.c.bf16 %v41, %v40
  %v59 = vpack.c.bf16 %v43, %v42
  %v60 = vld [vmem:[%s1] sm:$0xf]
  %v61 = vld [vmem:[%s1 + $0x4] sm:$0xf]
  %v62 = vld [vmem:[%s1 + $0x8] sm:$0xf]
  %v63 = vld [vmem:[%s1 + $0xc] sm:$0xf]
  %v64 = vld [vmem:[%s1 + $0x10] sm:$0xf]
  %v65 = vld [vmem:[%s1 + $0x14] sm:$0xf]
  %v66 = vld [vmem:[%s1 + $0x18] sm:$0xf]
  %v67 = vld [vmem:[%s1 + $0x1c] sm:$0xf]
  %v68 = vld [vmem:[%s1 + $0x20] sm:$0xf]
  %v69 = vld [vmem:[%s1 + $0x24] sm:$0xf]
  %v70 = vld [vmem:[%s1 + $0x28] sm:$0xf]
  %v71 = vld [vmem:[%s1 + $0x2c] sm:$0xf]
  %v72 = vld [vmem:[%s1 + $0x30] sm:$0xf]
  %v73 = vld [vmem:[%s1 + $0x34] sm:$0xf]
  %v74 = vld [vmem:[%s1 + $0x38] sm:$0xf]
  %v75 = vld [vmem:[%s1 + $0x3c] sm:$0xf]
  %v92 = vunpack.c.l.b16 %v60
  %v93 = vunpack.c.l.b16 %v61
  %v94 = vunpack.c.l.b16 %v62
  %v95 = vunpack.c.l.b16 %v63
  %v96 = vunpack.c.l.b16 %v64
  %v97 = vunpack.c.l.b16 %v65
  %v98 = vunpack.c.l.b16 %v66
  %v99 = vunpack.c.l.b16 %v67
  %v100 = vunpack.c.l.b16 %v68
  %v101 = vunpack.c.l.b16 %v69
  %v102 = vunpack.c.l.b16 %v70
  %v103 = vunpack.c.l.b16 %v71
  %v104 = vunpack.c.l.b16 %v72
  %v105 = vunpack.c.l.b16 %v73
  %v106 = vunpack.c.l.b16 %v74
  %v107 = vunpack.c.l.b16 %v75
  %v108 = vpack.c.b16 %v93, %v92
  %v109 = vpack.c.b16 %v95, %v94
  %v110 = vpack.c.b16 %v97, %v96
  %v111 = vpack.c.b16 %v99, %v98
  %v112 = vpack.c.b16 %v101, %v100
  %v113 = vpack.c.b16 %v103, %v102
  %v114 = vpack.c.b16 %v105, %v104
  %v115 = vpack.c.b16 %v107, %v106
  %124 = vmatprep.subr.bf16.mxu0 0
  %125 = vmatpush1.bf16.msra.mxu0 %v115
  %126 = vmatprep.subr.bf16.mxu0 0
  %127 = vmatpush1.bf16.msra.mxu0 %v114
  %128 = vmatprep.subr.bf16.mxu0 0
  %129 = vmatpush1.bf16.msra.mxu0 %v113
  %130 = vmatprep.subr.bf16.mxu0 0
  %131 = vmatpush1.bf16.msra.mxu0 %v112
  %132 = vmatprep.subr.bf16.mxu0 0
  %133 = vmatpush1.bf16.msra.mxu0 %v111
  %134 = vmatprep.subr.bf16.mxu0 0
  %135 = vmatpush1.bf16.msra.mxu0 %v110
  %136 = vmatprep.subr.bf16.mxu0 0
  %137 = vmatpush1.bf16.msra.mxu0 %v109
  %138 = vmatprep.subr.bf16.mxu0 0
  %139 = vmatpush1.bf16.msra.mxu0 %v108
  %140 = vmatprep.subr.bf16.mxu0 0
  %141 = vmatpush2.bf16.msra.mxu0 0
  %142 = vmatprep.subr.bf16.mxu0 0
  %143 = vmatpush2.bf16.msra.mxu0 0
  %144 = vmatprep.subr.bf16.mxu0 0
  %145 = vmatpush2.bf16.msra.mxu0 0
  %146 = vmatprep.subr.bf16.mxu0 0
  %147 = vmatpush2.bf16.msra.mxu0 0
  %148 = vmatprep.subr.bf16.mxu0 0
  %149 = vmatpush2.bf16.msra.mxu0 0
  %150 = vmatprep.subr.bf16.mxu0 0
  %151 = vmatpush2.bf16.msra.mxu0 0
  %152 = vmatprep.subr.bf16.mxu0 0
  %153 = vmatpush2.bf16.msra.mxu0 0
  %154 = vmatprep.subr.bf16.mxu0 0
  %155 = vmatpush2.bf16.msra.mxu0 0
  %156 = vmatprep.mubr.bf16.mxu0 0
  %157 = vmatmul.mubr.bf16.gmra.mxu0 %v44
  %v158 = vpop.f32.mrf.mxu0
  %v159 = vadd.f32 0.0, %v158
  %v160 = vpop.f32.mrf.mxu0
  %v161 = vpop.f32.mrf.mxu0
  %v162 = vadd.f32 0.0, %v161
  %v163 = vpop.f32.mrf.mxu0
  %164 = vmatprep.mubr.bf16.mxu0 0
  %165 = vmatmul.mubr.bf16.gmra.mxu0 %v45
  %v166 = vpop.f32.mrf.mxu0
  %v167 = vadd.f32 0.0, %v166
  %v168 = vpop.f32.mrf.mxu0
  %v169 = vpop.f32.mrf.mxu0
  %v170 = vadd.f32 0.0, %v169
  %v171 = vpop.f32.mrf.mxu0
  %172 = vmatprep.mubr.bf16.mxu0 0
  %173 = vmatmul.mubr.bf16.gmra.mxu0 %v46
  %v174 = vpop.f32.mrf.mxu0
  %v175 = vadd.f32 0.0, %v174
  %v176 = vpop.f32.mrf.mxu0
  %v177 = vpop.f32.mrf.mxu0
  %v178 = vadd.f32 0.0, %v177
  %v179 = vpop.f32.mrf.mxu0
  %180 = vmatprep.mubr.bf16.mxu0 0
  %181 = vmatmul.mubr.bf16.gmra.mxu0 %v47
  %v182 = vpop.f32.mrf.mxu0
  %v183 = vadd.f32 0.0, %v182
  %v184 = vpop.f32.mrf.mxu0
  %v185 = vpop.f32.mrf.mxu0
  %v186 = vadd.f32 0.0, %v185
  %v187 = vpop.f32.mrf.mxu0
  %188 = vmatprep.mubr.bf16.mxu0 0
  %189 = vmatmul.mubr.bf16.gmra.mxu0 %v48
  %v190 = vpop.f32.mrf.mxu0
  %v191 = vadd.f32 0.0, %v190
  %v192 = vpop.f32.mrf.mxu0
  %v193 = vpop.f32.mrf.mxu0
  %v194 = vadd.f32 0.0, %v193
  %v195 = vpop.f32.mrf.mxu0
  %196 = vmatprep.mubr.bf16.mxu0 0
  %197 = vmatmul.mubr.bf16.gmra.mxu0 %v49
  %v198 = vpop.f32.mrf.mxu0
  %v199 = vadd.f32 0.0, %v198
  %v200 = vpop.f32.mrf.mxu0
  %v201 = vpop.f32.mrf.mxu0
  %v202 = vadd.f32 0.0, %v201
  %v203 = vpop.f32.mrf.mxu0
  %204 = vmatprep.mubr.bf16.mxu0 0
  %205 = vmatmul.mubr.bf16.gmra.mxu0 %v50
  %v206 = vpop.f32.mrf.mxu0
  %v207 = vadd.f32 0.0, %v206
  %v208 = vpop.f32.mrf.mxu0
  %v209 = vpop.f32.mrf.mxu0
  %v210 = vadd.f32 0.0, %v209
  %v211 = vpop.f32.mrf.mxu0
  %212 = vmatprep.mubr.bf16.mxu0 0
  %213 = vmatmul.mubr.bf16.gmra.mxu0 %v51
  %v214 = vpop.f32.mrf.mxu0
  %v215 = vadd.f32 0.0, %v214
  %v216 = vpop.f32.mrf.mxu0
  %v217 = vpop.f32.mrf.mxu0
  %v218 = vadd.f32 0.0, %v217
  %v219 = vpop.f32.mrf.mxu0
  %220 = vmatprep.mubr.bf16.mxu0 0
  %221 = vmatmul.mubr.bf16.gmra.mxu0 %v52
  %v222 = vpop.f32.mrf.mxu0
  %v223 = vadd.f32 0.0, %v222
  %v224 = vpop.f32.mrf.mxu0
  %v225 = vpop.f32.mrf.mxu0
  %v226 = vadd.f32 0.0, %v225
  %v227 = vpop.f32.mrf.mxu0
  %228 = vmatprep.mubr.bf16.mxu0 0
  %229 = vmatmul.mubr.bf16.gmra.mxu0 %v53
  %v230 = vpop.f32.mrf.mxu0
  %v231 = vadd.f32 0.0, %v230
  %v232 = vpop.f32.mrf.mxu0
  %v233 = vpop.f32.mrf.mxu0
  %v234 = vadd.f32 0.0, %v233
  %v235 = vpop.f32.mrf.mxu0
  %236 = vmatprep.mubr.bf16.mxu0 0
  %237 = vmatmul.mubr.bf16.gmra.mxu0 %v54
  %v238 = vpop.f32.mrf.mxu0
  %v239 = vadd.f32 0.0, %v238
  %v240 = vpop.f32.mrf.mxu0
  %v241 = vpop.f32.mrf.mxu0
  %v242 = vadd.f32 0.0, %v241
  %v243 = vpop.f32.mrf.mxu0
  %244 = vmatprep.mubr.bf16.mxu0 0
  %245 = vmatmul.mubr.bf16.gmra.mxu0 %v55
  %v246 = vpop.f32.mrf.mxu0
  %v247 = vadd.f32 0.0, %v246
  %v248 = vpop.f32.mrf.mxu0
  %v249 = vpop.f32.mrf.mxu0
  %v250 = vadd.f32 0.0, %v249
  %v251 = vpop.f32.mrf.mxu0
  %252 = vmatprep.mubr.bf16.mxu0 0
  %253 = vmatmul.mubr.bf16.gmra.mxu0 %v56
  %v254 = vpop.f32.mrf.mxu0
  %v255 = vadd.f32 0.0, %v254
  %v256 = vpop.f32.mrf.mxu0
  %v257 = vpop.f32.mrf.mxu0
  %v258 = vadd.f32 0.0, %v257
  %v259 = vpop.f32.mrf.mxu0
  %260 = vmatprep.mubr.bf16.mxu0 0
  %261 = vmatmul.mubr.bf16.gmra.mxu0 %v57
  %v262 = vpop.f32.mrf.mxu0
  %v263 = vadd.f32 0.0, %v262
  %v264 = vpop.f32.mrf.mxu0
  %v265 = vpop.f32.mrf.mxu0
  %v266 = vadd.f32 0.0, %v265
  %v267 = vpop.f32.mrf.mxu0
  %268 = vmatprep.mubr.bf16.mxu0 0
  %269 = vmatmul.mubr.bf16.gmra.mxu0 %v58
  %v270 = vpop.f32.mrf.mxu0
  %v271 = vadd.f32 0.0, %v270
  %v272 = vpop.f32.mrf.mxu0
  %v273 = vpop.f32.mrf.mxu0
  %v274 = vadd.f32 0.0, %v273
  %v275 = vpop.f32.mrf.mxu0
  %276 = vmatprep.mubr.bf16.mxu0 0
  %277 = vmatmul.mubr.bf16.gmra.mxu0 %v59
  %v278 = vpop.f32.mrf.mxu0
  %v279 = vadd.f32 0.0, %v278
  %v280 = vpop.f32.mrf.mxu0
  %v281 = vpop.f32.mrf.mxu0
  %v282 = vadd.f32 0.0, %v281
  %v283 = vpop.f32.mrf.mxu0
  %284 = vdwg.mxu0
  %v285 = vpack.c.bf16 %v162, %v159
  %v286 = vpack.c.bf16 %v170, %v167
  %v287 = vpack.c.bf16 %v178, %v175
  %v288 = vpack.c.bf16 %v186, %v183
  %v289 = vpack.c.bf16 %v194, %v191
  %v290 = vpack.c.bf16 %v202, %v199
  %v291 = vpack.c.bf16 %v210, %v207
  %v292 = vpack.c.bf16 %v218, %v215
  %v293 = vpack.c.bf16 %v226, %v223
  %v294 = vpack.c.bf16 %v234, %v231
  %v295 = vpack.c.bf16 %v242, %v239
  %v296 = vpack.c.bf16 %v250, %v247
  %v297 = vpack.c.bf16 %v258, %v255
  %v298 = vpack.c.bf16 %v266, %v263
  %v299 = vpack.c.bf16 %v274, %v271
  %v300 = vpack.c.bf16 %v282, %v279
  %v317 = vunpack.c.l.b16 %v285
  %v318 = vunpack.c.h.b16 %v285
  %v319 = vunpack.c.l.b16 %v286
  %v320 = vunpack.c.h.b16 %v286
  %v321 = vunpack.c.l.b16 %v287
  %v322 = vunpack.c.h.b16 %v287
  %v323 = vunpack.c.l.b16 %v288
  %v324 = vunpack.c.h.b16 %v288
  %v325 = vunpack.c.l.b16 %v289
  %v326 = vunpack.c.h.b16 %v289
  %v327 = vunpack.c.l.b16 %v290
  %v328 = vunpack.c.h.b16 %v290
  %v329 = vunpack.c.l.b16 %v291
  %v330 = vunpack.c.h.b16 %v291
  %v331 = vunpack.c.l.b16 %v292
  %v332 = vunpack.c.h.b16 %v292
  %v333 = vunpack.c.l.b16 %v293
  %v334 = vunpack.c.h.b16 %v293
  %v335 = vunpack.c.l.b16 %v294
  %v336 = vunpack.c.h.b16 %v294
  %v337 = vunpack.c.l.b16 %v295
  %v338 = vunpack.c.h.b16 %v295
  %v339 = vunpack.c.l.b16 %v296
  %v340 = vunpack.c.h.b16 %v296
  %v341 = vunpack.c.l.b16 %v297
  %v342 = vunpack.c.h.b16 %v297
  %v343 = vunpack.c.l.b16 %v298
  %v344 = vunpack.c.h.b16 %v298
  %v345 = vunpack.c.l.b16 %v299
  %v346 = vunpack.c.h.b16 %v299
  %v347 = vunpack.c.l.b16 %v300
  %v348 = vunpack.c.h.b16 %v300
  %v349 = vpack.c.b16 %v317, %v317
  %v350 = vpack.c.b16 %v318, %v318
  %v351 = vpack.c.b16 %v319, %v319
  %v352 = vpack.c.b16 %v320, %v320
  %v353 = vpack.c.b16 %v321, %v321
  %v354 = vpack.c.b16 %v322, %v322
  %v355 = vpack.c.b16 %v323, %v323
  %v356 = vpack.c.b16 %v324, %v324
  %v357 = vpack.c.b16 %v325, %v325
  %v358 = vpack.c.b16 %v326, %v326
  %v359 = vpack.c.b16 %v327, %v327
  %v360 = vpack.c.b16 %v328, %v328
  %v361 = vpack.c.b16 %v329, %v329
  %v362 = vpack.c.b16 %v330, %v330
  %v363 = vpack.c.b16 %v331, %v331
  %v364 = vpack.c.b16 %v332, %v332
  %v365 = vpack.c.b16 %v333, %v333
  %v366 = vpack.c.b16 %v334, %v334
  %v367 = vpack.c.b16 %v335, %v335
  %v368 = vpack.c.b16 %v336, %v336
  %v369 = vpack.c.b16 %v337, %v337
  %v370 = vpack.c.b16 %v338, %v338
  %v371 = vpack.c.b16 %v339, %v339
  %v372 = vpack.c.b16 %v340, %v340
  %v373 = vpack.c.b16 %v341, %v341
  %v374 = vpack.c.b16 %v342, %v342
  %v375 = vpack.c.b16 %v343, %v343
  %v376 = vpack.c.b16 %v344, %v344
  %v377 = vpack.c.b16 %v345, %v345
  %v378 = vpack.c.b16 %v346, %v346
  %v379 = vpack.c.b16 %v347, %v347
  %v380 = vpack.c.b16 %v348, %v348
  %413 = vst [vmem:[%s2] sm:$0xf] %v349
  %414 = vst [vmem:[%s2 + $0x4] sm:$0xf] %v350
  %415 = vst [vmem:[%s2 + $0x8] sm:$0xf] %v351
  %416 = vst [vmem:[%s2 + $0xc] sm:$0xf] %v352
  %417 = vst [vmem:[%s2 + $0x10] sm:$0xf] %v353
  %418 = vst [vmem:[%s2 + $0x14] sm:$0xf] %v354
  %419 = vst [vmem:[%s2 + $0x18] sm:$0xf] %v355
  %420 = vst [vmem:[%s2 + $0x1c] sm:$0xf] %v356
  %421 = vst [vmem:[%s2 + $0x20] sm:$0xf] %v357
  %422 = vst [vmem:[%s2 + $0x24] sm:$0xf] %v358
  %423 = vst [vmem:[%s2 + $0x28] sm:$0xf] %v359
  %424 = vst [vmem:[%s2 + $0x2c] sm:$0xf] %v360
  %425 = vst [vmem:[%s2 + $0x30] sm:$0xf] %v361
  %426 = vst [vmem:[%s2 + $0x34] sm:$0xf] %v362
  %427 = vst [vmem:[%s2 + $0x38] sm:$0xf] %v363
  %428 = vst [vmem:[%s2 + $0x3c] sm:$0xf] %v364
  %429 = vst [vmem:[%s2 + $0x40] sm:$0xf] %v365
  %430 = vst [vmem:[%s2 + $0x44] sm:$0xf] %v366
  %431 = vst [vmem:[%s2 + $0x48] sm:$0xf] %v367
  %432 = vst [vmem:[%s2 + $0x4c] sm:$0xf] %v368
  %433 = vst [vmem:[%s2 + $0x50] sm:$0xf] %v369
  %434 = vst [vmem:[%s2 + $0x54] sm:$0xf] %v370
  %435 = vst [vmem:[%s2 + $0x58] sm:$0xf] %v371
  %436 = vst [vmem:[%s2 + $0x5c] sm:$0xf] %v372
  %437 = vst [vmem:[%s2 + $0x60] sm:$0xf] %v373
  %438 = vst [vmem:[%s2 + $0x64] sm:$0xf] %v374
  %439 = vst [vmem:[%s2 + $0x68] sm:$0xf] %v375
  %440 = vst [vmem:[%s2 + $0x6c] sm:$0xf] %v376
  %441 = vst [vmem:[%s2 + $0x70] sm:$0xf] %v377
  %442 = vst [vmem:[%s2 + $0x74] sm:$0xf] %v378
  %443 = vst [vmem:[%s2 + $0x78] sm:$0xf] %v379
  %444 = vst [vmem:[%s2 + $0x7c] sm:$0xf] %v380
  // Predicated region
  $region10: #{gae_forward.8} parent=0 // pred_check
    _
  $region11: #{gae_forward.8} parent=0 // pred_check_branch
    %446 = sbr.rel (0) target = $region13
  $region12: #{gae_forward.8} parent=0 // pred_region
    _
  $region13: #{gae_forward.8} parent=0 // pred_fallthru
    _
  // Predicated region
  $region14: #{gae_forward.8} parent=0 // pred_check
    _
  $region15: #{gae_forward.8} parent=0 // pred_check_branch
    %448 = sbr.rel (0) target = $region17
  $region16: #{gae_forward.8} parent=0 // pred_region
    _
  $region17: #{gae_forward.8} parent=0 // pred_fallthru
    _

// kernel: gae_forward.9
$region0: #{gae_forward.9}
  #allocation0 [shape = 'u32[]', space=smem, size = 0x4, offset = 0x4, fixed_abs, tag = 'smem constant byte address 0x4 - core index']
  #allocation1 [shape = 'u32[144,128]{1,0:T(1,128)}', space=vmem, size = 0x12000, scoped, tag = 'internal scratch']
  #allocation2 [shape = 'f32[256,128]{1,0:T(8,128)}', space=vmem, size = 0x20000, scoped, tag = 'scratch operand']
  %s0 = inlined_call_operand.vmem [shape: bf16[256,256], index: 0, kind: input, shape index: {}]
  %s1 = inlined_call_operand.vmem [shape: bf16[256,128], index: 1, kind: input, shape index: {}]
  %s2 = inlined_call_operand.vmem [shape: f32[1,128], index: 2, kind: input, shape index: {}]
  %s3 = inlined_call_operand.vmem [shape: f32[256,128], index: 3, kind: output, shape index: {}]
  %s4 = sld [smem:[#allocation0]]
  $region30: #{gae_forward.9} parent=0
    _
  %s6 = ssub.s32 1, %s4
  %s7 = scalar_select 0, %s6, %s4
  // Predicated region
  $region2: #{gae_forward.9} parent=0 // pred_check
    _
  $region3: #{gae_forward.9} parent=0 // pred_check_branch
    %9 = sbr.rel (0) target = $region5
  $region4: #{gae_forward.9} parent=0 // pred_region
    _
  $region5: #{gae_forward.9} parent=0 // pred_fallthru
    _
  // Predicated region
  $region6: #{gae_forward.9} parent=0 // pred_check
    _
  $region7: #{gae_forward.9} parent=0 // pred_check_branch
    %11 = sbr.rel (0) target = $region9
  $region8: #{gae_forward.9} parent=0 // pred_region
    _
  $region9: #{gae_forward.9} parent=0 // pred_fallthru
    _
  // Predicated region
  $region10: #{gae_forward.9} parent=0 // pred_check
    _
  $region11: #{gae_forward.9} parent=0 // pred_check_branch
    %13 = sbr.rel (0) target = $region13
  $region12: #{gae_forward.9} parent=0 // pred_region
    _
  $region13: #{gae_forward.9} parent=0 // pred_fallthru
    _
  %p15 = scmp.eq.s32.totalorder 0, 0
  // Predicated region
  $region14: #{gae_forward.9} parent=0 // pred_check
    %p16 = pneg %p15
  $region15: #{gae_forward.9} parent=0 // pred_check_branch
    %18 = sbr.rel (%p16) target = $region17
  $region16: #{gae_forward.9} parent=0 // pred_region
    %19 = vst [vmem:[#allocation2] sm:$0xff] 0.0
    %20 = vst [vmem:[#allocation2 + $0x8] sm:$0xff] 0.0
    %21 = vst [vmem:[#allocation2 + $0x10] sm:$0xff] 0.0
    %22 = vst [vmem:[#allocation2 + $0x18] sm:$0xff] 0.0
    %23 = vst [vmem:[#allocation2 + $0x20] sm:$0xff] 0.0
    %24 = vst [vmem:[#allocation2 + $0x28] sm:$0xff] 0.0
    %25 = vst [vmem:[#allocation2 + $0x30] sm:$0xff] 0.0
    %26 = vst [vmem:[#allocation2 + $0x38] sm:$0xff] 0.0
    %27 = vst [vmem:[#allocation2 + $0x40] sm:$0xff] 0.0
    %28 = vst [vmem:[#allocation2 + $0x48] sm:$0xff] 0.0
    %29 = vst [vmem:[#allocation2 + $0x50] sm:$0xff] 0.0
    %30 = vst [vmem:[#allocation2 + $0x58] sm:$0xff] 0.0
    %31 = vst [vmem:[#allocation2 + $0x60] sm:$0xff] 0.0
    %32 = vst [vmem:[#allocation2 + $0x68] sm:$0xff] 0.0
    %33 = vst [vmem:[#allocation2 + $0x70] sm:$0xff] 0.0
    %34 = vst [vmem:[#allocation2 + $0x78] sm:$0xff] 0.0
    %35 = vst [vmem:[#allocation2 + $0x80] sm:$0xff] 0.0
    %36 = vst [vmem:[#allocation2 + $0x88] sm:$0xff] 0.0
    %37 = vst [vmem:[#allocation2 + $0x90] sm:$0xff] 0.0
    %38 = vst [vmem:[#allocation2 + $0x98] sm:$0xff] 0.0
    %39 = vst [vmem:[#allocation2 + $0xa0] sm:$0xff] 0.0
    %40 = vst [vmem:[#allocation2 + $0xa8] sm:$0xff] 0.0
    %41 = vst [vmem:[#allocation2 + $0xb0] sm:$0xff] 0.0
    %42 = vst [vmem:[#allocation2 + $0xb8] sm:$0xff] 0.0
    %43 = vst [vmem:[#allocation2 + $0xc0] sm:$0xff] 0.0
    %44 = vst [vmem:[#allocation2 + $0xc8] sm:$0xff] 0.0
    %45 = vst [vmem:[#allocation2 + $0xd0] sm:$0xff] 0.0
    %46 = vst [vmem:[#allocation2 + $0xd8] sm:$0xff] 0.0
    %47 = vst [vmem:[#allocation2 + $0xe0] sm:$0xff] 0.0
    %48 = vst [vmem:[#allocation2 + $0xe8] sm:$0xff] 0.0
    %49 = vst [vmem:[#allocation2 + $0xf0] sm:$0xff] 0.0
    %50 = vst [vmem:[#allocation2 + $0xf8] sm:$0xff] 0.0
  $region17: #{gae_forward.9} parent=0 // pred_fallthru
    _
  %v51 = vld [vmem:[#allocation2] sm:$0xff]
  %v52 = vld [vmem:[#allocation2 + $0x8] sm:$0xff]
  %v53 = vld [vmem:[#allocation2 + $0x10] sm:$0xff]
  %v54 = vld [vmem:[#allocation2 + $0x18] sm:$0xff]
  %v55 = vld [vmem:[#allocation2 + $0x20] sm:$0xff]
  %v56 = vld [vmem:[#allocation2 + $0x28] sm:$0xff]
  %v57 = vld [vmem:[#allocation2 + $0x30] sm:$0xff]
  %v58 = vld [vmem:[#allocation2 + $0x38] sm:$0xff]
  %v59 = vld [vmem:[#allocation2 + $0x40] sm:$0xff]
  %v60 = vld [vmem:[#allocation2 + $0x48] sm:$0xff]
  %v61 = vld [vmem:[#allocation2 + $0x50] sm:$0xff]
  %v62 = vld [vmem:[#allocation2 + $0x58] sm:$0xff]
  %v63 = vld [vmem:[#allocation2 + $0x60] sm:$0xff]
  %v64 = vld [vmem:[#allocation2 + $0x68] sm:$0xff]
  %v65 = vld [vmem:[#allocation2 + $0x70] sm:$0xff]
  %v66 = vld [vmem:[#allocation2 + $0x78] sm:$0xff]
  %v67 = vld [vmem:[#allocation2 + $0x80] sm:$0xff]
  %v68 = vld [vmem:[#allocation2 + $0x88] sm:$0xff]
  %v69 = vld [vmem:[#allocation2 + $0x90] sm:$0xff]
  %v70 = vld [vmem:[#allocation2 + $0x98] sm:$0xff]
  %v71 = vld [vmem:[#allocation2 + $0xa0] sm:$0xff]
  %v72 = vld [vmem:[#allocation2 + $0xa8] sm:$0xff]
  %v73 = vld [vmem:[#allocation2 + $0xb0] sm:$0xff]
  %v74 = vld [vmem:[#allocation2 + $0xb8] sm:$0xff]
  %v75 = vld [vmem:[#allocation2 + $0xc0] sm:$0xff]
  %v76 = vld [vmem:[#allocation2 + $0xc8] sm:$0xff]
  %v77 = vld [vmem:[#allocation2 + $0xd0] sm:$0xff]
  %v78 = vld [vmem:[#allocation2 + $0xd8] sm:$0xff]
  %v79 = vld [vmem:[#allocation2 + $0xe0] sm:$0xff]
  %v80 = vld [vmem:[#allocation2 + $0xe8] sm:$0xff]
  %v81 = vld [vmem:[#allocation2 + $0xf0] sm:$0xff]
  %v82 = vld [vmem:[#allocation2 + $0xf8] sm:$0xff]
  %v83 = vld [vmem:[%s0] sm:$0xff]
  %v84 = vld [vmem:[%s0 + $0x8] sm:$0xff]
  %v85 = vld [vmem:[%s0 + $0x10] sm:$0xff]
  %v86 = vld [vmem:[%s0 + $0x18] sm:$0xff]
  %v87 = vld [vmem:[%s0 + $0x20] sm:$0xff]
  %v88 = vld [vmem:[%s0 + $0x28] sm:$0xff]
  %v89 = vld [vmem:[%s0 + $0x30] sm:$0xff]
  %v90 = vld [vmem:[%s0 + $0x38] sm:$0xff]
  %v91 = vld [vmem:[%s0 + $0x40] sm:$0xff]
  %v92 = vld [vmem:[%s0 + $0x48] sm:$0xff]
  %v93 = vld [vmem:[%s0 + $0x50] sm:$0xff]
  %v94 = vld [vmem:[%s0 + $0x58] sm:$0xff]
  %v95 = vld [vmem:[%s0 + $0x60] sm:$0xff]
  %v96 = vld [vmem:[%s0 + $0x68] sm:$0xff]
  %v97 = vld [vmem:[%s0 + $0x70] sm:$0xff]
  %v98 = vld [vmem:[%s0 + $0x78] sm:$0xff]
  %v99 = vld [vmem:[%s0 + $0x80] sm:$0xff]
  %v100 = vld [vmem:[%s0 + $0x88] sm:$0xff]
  %v101 = vld [vmem:[%s0 + $0x90] sm:$0xff]
  %v102 = vld [vmem:[%s0 + $0x98] sm:$0xff]
  %v103 = vld [vmem:[%s0 + $0xa0] sm:$0xff]
  %v104 = vld [vmem:[%s0 + $0xa8] sm:$0xff]
  %v105 = vld [vmem:[%s0 + $0xb0] sm:$0xff]
  %v106 = vld [vmem:[%s0 + $0xb8] sm:$0xff]
  %v107 = vld [vmem:[%s0 + $0xc0] sm:$0xff]
  %v108 = vld [vmem:[%s0 + $0xc8] sm:$0xff]
  %v109 = vld [vmem:[%s0 + $0xd0] sm:$0xff]
  %v110 = vld [vmem:[%s0 + $0xd8] sm:$0xff]
  %v111 = vld [vmem:[%s0 + $0xe0] sm:$0xff]
  %v112 = vld [vmem:[%s0 + $0xe8] sm:$0xff]
  %v113 = vld [vmem:[%s0 + $0xf0] sm:$0xff]
  %v114 = vld [vmem:[%s0 + $0xf8] sm:$0xff]
  %v115 = vld [vmem:[%s1] sm:$0xf]
  %v116 = vld [vmem:[%s1 + $0x4] sm:$0xf]
  %v117 = vld [vmem:[%s1 + $0x8] sm:$0xf]
  %v118 = vld [vmem:[%s1 + $0xc] sm:$0xf]
  %v119 = vld [vmem:[%s1 + $0x10] sm:$0xf]
  %v120 = vld [vmem:[%s1 + $0x14] sm:$0xf]
  %v121 = vld [vmem:[%s1 + $0x18] sm:$0xf]
  %v122 = vld [vmem:[%s1 + $0x1c] sm:$0xf]
  %v123 = vld [vmem:[%s1 + $0x20] sm:$0xf]
  %v124 = vld [vmem:[%s1 + $0x24] sm:$0xf]
  %v125 = vld [vmem:[%s1 + $0x28] sm:$0xf]
  %v126 = vld [vmem:[%s1 + $0x2c] sm:$0xf]
  %v127 = vld [vmem:[%s1 + $0x30] sm:$0xf]
  %v128 = vld [vmem:[%s1 + $0x34] sm:$0xf]
  %v129 = vld [vmem:[%s1 + $0x38] sm:$0xf]
  %v130 = vld [vmem:[%s1 + $0x3c] sm:$0xf]
  %v131 = vld [vmem:[%s1 + $0x40] sm:$0xf]
  %v132 = vld [vmem:[%s1 + $0x44] sm:$0xf]
  %v133 = vld [vmem:[%s1 + $0x48] sm:$0xf]
  %v134 = vld [vmem:[%s1 + $0x4c] sm:$0xf]
  %v135 = vld [vmem:[%s1 + $0x50] sm:$0xf]
  %v136 = vld [vmem:[%s1 + $0x54] sm:$0xf]
  %v137 = vld [vmem:[%s1 + $0x58] sm:$0xf]
  %v138 = vld [vmem:[%s1 + $0x5c] sm:$0xf]
  %v139 = vld [vmem:[%s1 + $0x60] sm:$0xf]
  %v140 = vld [vmem:[%s1 + $0x64] sm:$0xf]
  %v141 = vld [vmem:[%s1 + $0x68] sm:$0xf]
  %v142 = vld [vmem:[%s1 + $0x6c] sm:$0xf]
  %v143 = vld [vmem:[%s1 + $0x70] sm:$0xf]
  %v144 = vld [vmem:[%s1 + $0x74] sm:$0xf]
  %v145 = vld [vmem:[%s1 + $0x78] sm:$0xf]
  %v146 = vld [vmem:[%s1 + $0x7c] sm:$0xf]
  %v179 = vunpack.c.l.b16 %v83
  %v180 = vunpack.c.h.b16 %v83
  %v181 = vunpack.c.l.b16 %v84
  %v182 = vunpack.c.h.b16 %v84
  %v183 = vunpack.c.l.b16 %v85
  %v184 = vunpack.c.h.b16 %v85
  %v185 = vunpack.c.l.b16 %v86
  %v186 = vunpack.c.h.b16 %v86
  %v187 = vunpack.c.l.b16 %v87
  %v188 = vunpack.c.h.b16 %v87
  %v189 = vunpack.c.l.b16 %v88
  %v190 = vunpack.c.h.b16 %v88
  %v191 = vunpack.c.l.b16 %v89
  %v192 = vunpack.c.h.b16 %v89
  %v193 = vunpack.c.l.b16 %v90
  %v194 = vunpack.c.h.b16 %v90
  %v195 = vunpack.c.l.b16 %v91
  %v196 = vunpack.c.h.b16 %v91
  %v197 = vunpack.c.l.b16 %v92
  %v198 = vunpack.c.h.b16 %v92
  %v199 = vunpack.c.l.b16 %v93
  %v200 = vunpack.c.h.b16 %v93
  %v201 = vunpack.c.l.b16 %v94
  %v202 = vunpack.c.h.b16 %v94
  %v203 = vunpack.c.l.b16 %v95
  %v204 = vunpack.c.h.b16 %v95
  %v205 = vunpack.c.l.b16 %v96
  %v206 = vunpack.c.h.b16 %v96
  %v207 = vunpack.c.l.b16 %v97
  %v208 = vunpack.c.h.b16 %v97
  %v209 = vunpack.c.l.b16 %v98
  %v210 = vunpack.c.h.b16 %v98
  %v211 = vunpack.c.l.b16 %v99
  %v212 = vunpack.c.h.b16 %v99
  %v213 = vunpack.c.l.b16 %v100
  %v214 = vunpack.c.h.b16 %v100
  %v215 = vunpack.c.l.b16 %v101
  %v216 = vunpack.c.h.b16 %v101
  %v217 = vunpack.c.l.b16 %v102
  %v218 = vunpack.c.h.b16 %v102
  %v219 = vunpack.c.l.b16 %v103
  %v220 = vunpack.c.h.b16 %v103
  %v221 = vunpack.c.l.b16 %v104
  %v222 = vunpack.c.h.b16 %v104
  %v223 = vunpack.c.l.b16 %v105
  %v224 = vunpack.c.h.b16 %v105
  %v225 = vunpack.c.l.b16 %v106
  %v226 = vunpack.c.h.b16 %v106
  %v227 = vunpack.c.l.b16 %v107
  %v228 = vunpack.c.h.b16 %v107
  %v229 = vunpack.c.l.b16 %v108
  %v230 = vunpack.c.h.b16 %v108
  %v231 = vunpack.c.l.b16 %v109
  %v232 = vunpack.c.h.b16 %v109
  %v233 = vunpack.c.l.b16 %v110
  %v234 = vunpack.c.h.b16 %v110
  %v235 = vunpack.c.l.b16 %v111
  %v236 = vunpack.c.h.b16 %v111
  %v237 = vunpack.c.l.b16 %v112
  %v238 = vunpack.c.h.b16 %v112
  %v239 = vunpack.c.l.b16 %v113
  %v240 = vunpack.c.h.b16 %v113
  %v241 = vunpack.c.l.b16 %v114
  %v242 = vunpack.c.h.b16 %v114
  %v243 = vpack.c.b16 %v181, %v179
  %v244 = vpack.c.b16 %v182, %v180
  %v245 = vpack.c.b16 %v185, %v183
  %v246 = vpack.c.b16 %v186, %v184
  %v247 = vpack.c.b16 %v189, %v187
  %v248 = vpack.c.b16 %v190, %v188
  %v249 = vpack.c.b16 %v193, %v191
  %v250 = vpack.c.b16 %v194, %v192
  %v251 = vpack.c.b16 %v197, %v195
  %v252 = vpack.c.b16 %v198, %v196
  %v253 = vpack.c.b16 %v201, %v199
  %v254 = vpack.c.b16 %v202, %v200
  %v255 = vpack.c.b16 %v205, %v203
  %v256 = vpack.c.b16 %v206, %v204
  %v257 = vpack.c.b16 %v209, %v207
  %v258 = vpack.c.b16 %v210, %v208
  %v259 = vpack.c.b16 %v213, %v211
  %v260 = vpack.c.b16 %v214, %v212
  %v261 = vpack.c.b16 %v217, %v215
  %v262 = vpack.c.b16 %v218, %v216
  %v263 = vpack.c.b16 %v221, %v219
  %v264 = vpack.c.b16 %v222, %v220
  %v265 = vpack.c.b16 %v225, %v223
  %v266 = vpack.c.b16 %v226, %v224
  %v267 = vpack.c.b16 %v229, %v227
  %v268 = vpack.c.b16 %v230, %v228
  %v269 = vpack.c.b16 %v233, %v231
  %v270 = vpack.c.b16 %v234, %v232
  %v271 = vpack.c.b16 %v237, %v235
  %v272 = vpack.c.b16 %v238, %v236
  %v273 = vpack.c.b16 %v241, %v239
  %v274 = vpack.c.b16 %v242, %v240
  %v339 = vunpack.c.l.b16 %v115
  %v340 = vunpack.c.l.b16 %v116
  %v341 = vunpack.c.l.b16 %v117
  %v342 = vunpack.c.l.b16 %v118
  %v343 = vunpack.c.l.b16 %v119
  %v344 = vunpack.c.l.b16 %v120
  %v345 = vunpack.c.l.b16 %v121
  %v346 = vunpack.c.l.b16 %v122
  %v347 = vunpack.c.l.b16 %v123
  %v348 = vunpack.c.l.b16 %v124
  %v349 = vunpack.c.l.b16 %v125
  %v350 = vunpack.c.l.b16 %v126
  %v351 = vunpack.c.l.b16 %v127
  %v352 = vunpack.c.l.b16 %v128
  %v353 = vunpack.c.l.b16 %v129
  %v354 = vunpack.c.l.b16 %v130
  %v355 = vunpack.c.l.b16 %v131
  %v356 = vunpack.c.l.b16 %v132
  %v357 = vunpack.c.l.b16 %v133
  %v358 = vunpack.c.l.b16 %v134
  %v359 = vunpack.c.l.b16 %v135
  %v360 = vunpack.c.l.b16 %v136
  %v361 = vunpack.c.l.b16 %v137
  %v362 = vunpack.c.l.b16 %v138
  %v363 = vunpack.c.l.b16 %v139
  %v364 = vunpack.c.l.b16 %v140
  %v365 = vunpack.c.l.b16 %v141
  %v366 = vunpack.c.l.b16 %v142
  %v367 = vunpack.c.l.b16 %v143
  %v368 = vunpack.c.l.b16 %v144
  %v369 = vunpack.c.l.b16 %v145
  %v370 = vunpack.c.l.b16 %v146
  %v371 = vpack.c.b16 %v340, %v339
  %v372 = vpack.c.b16 %v342, %v341
  %v373 = vpack.c.b16 %v344, %v343
  %v374 = vpack.c.b16 %v346, %v345
  %v375 = vpack.c.b16 %v348, %v347
  %v376 = vpack.c.b16 %v350, %v349
  %v377 = vpack.c.b16 %v352, %v351
  %v378 = vpack.c.b16 %v354, %v353
  %v379 = vpack.c.b16 %v356, %v355
  %v380 = vpack.c.b16 %v358, %v357
  %v381 = vpack.c.b16 %v360, %v359
  %v382 = vpack.c.b16 %v362, %v361
  %v383 = vpack.c.b16 %v364, %v363
  %v384 = vpack.c.b16 %v366, %v365
  %v385 = vpack.c.b16 %v368, %v367
  %v386 = vpack.c.b16 %v370, %v369
  %403 = vmatprep.subr.bf16.mxu0 0
  %404 = vmatpush1.bf16.msra.mxu0 %v378
  %405 = vmatprep.subr.bf16.mxu0 0
  %406 = vmatpush1.bf16.msra.mxu0 %v377
  %407 = vmatprep.subr.bf16.mxu0 0
  %408 = vmatpush1.bf16.msra.mxu0 %v376
  %409 = vmatprep.subr.bf16.mxu0 0
  %410 = vmatpush1.bf16.msra.mxu0 %v375
  %411 = vmatprep.subr.bf16.mxu0 0
  %412 = vmatpush1.bf16.msra.mxu0 %v374
  %413 = vmatprep.subr.bf16.mxu0 0
  %414 = vmatpush1.bf16.msra.mxu0 %v373
  %415 = vmatprep.subr.bf16.mxu0 0
  %416 = vmatpush1.bf16.msra.mxu0 %v372
  %417 = vmatprep.subr.bf16.mxu0 0
  %418 = vmatpush1.bf16.msra.mxu0 %v371
  %419 = vmatprep.subr.bf16.mxu0 0
  %420 = vmatpush2.bf16.msra.mxu0 %v386
  %421 = vmatprep.subr.bf16.mxu0 0
  %422 = vmatpush2.bf16.msra.mxu0 %v385
  %423 = vmatprep.subr.bf16.mxu0 0
  %424 = vmatpush2.bf16.msra.mxu0 %v384
  %425 = vmatprep.subr.bf16.mxu0 0
  %426 = vmatpush2.bf16.msra.mxu0 %v383
  %427 = vmatprep.subr.bf16.mxu0 0
  %428 = vmatpush2.bf16.msra.mxu0 %v382
  %429 = vmatprep.subr.bf16.mxu0 0
  %430 = vmatpush2.bf16.msra.mxu0 %v381
  %431 = vmatprep.subr.bf16.mxu0 0
  %432 = vmatpush2.bf16.msra.mxu0 %v380
  %433 = vmatprep.subr.bf16.mxu0 0
  %434 = vmatpush2.bf16.msra.mxu0 %v379
  %435 = vmatprep.mubr.bf16.mxu0 %v244
  %436 = vmatmul.mubr.bf16.gmra.mxu0 %v243
  %v437 = vpop.f32.mrf.mxu0
  %v438 = vadd.f32 0.0, %v437
  %v439 = vpop.f32.mrf.mxu0
  %v440 = vpop.f32.mrf.mxu0
  %v441 = vadd.f32 0.0, %v440
  %v442 = vpop.f32.mrf.mxu0
  %443 = vmatprep.mubr.bf16.mxu0 %v246
  %444 = vmatmul.mubr.bf16.gmra.mxu0 %v245
  %v445 = vpop.f32.mrf.mxu0
  %v446 = vadd.f32 0.0, %v445
  %v447 = vpop.f32.mrf.mxu0
  %v448 = vpop.f32.mrf.mxu0
  %v449 = vadd.f32 0.0, %v448
  %v450 = vpop.f32.mrf.mxu0
  %451 = vmatprep.mubr.bf16.mxu0 %v248
  %452 = vmatmul.mubr.bf16.gmra.mxu0 %v247
  %v453 = vpop.f32.mrf.mxu0
  %v454 = vadd.f32 0.0, %v453
  %v455 = vpop.f32.mrf.mxu0
  %v456 = vpop.f32.mrf.mxu0
  %v457 = vadd.f32 0.0, %v456
  %v458 = vpop.f32.mrf.mxu0
  %459 = vmatprep.mubr.bf16.mxu0 %v250
  %460 = vmatmul.mubr.bf16.gmra.mxu0 %v249
  %v461 = vpop.f32.mrf.mxu0
  %v462 = vadd.f32 0.0, %v461
  %v463 = vpop.f32.mrf.mxu0
  %v464 = vpop.f32.mrf.mxu0
  %v465 = vadd.f32 0.0, %v464
  %v466 = vpop.f32.mrf.mxu0
  %467 = vmatprep.mubr.bf16.mxu0 %v252
  %468 = vmatmul.mubr.bf16.gmra.mxu0 %v251
  %v469 = vpop.f32.mrf.mxu0
  %v470 = vadd.f32 0.0, %v469
  %v471 = vpop.f32.mrf.mxu0
  %v472 = vpop.f32.mrf.mxu0
  %v473 = vadd.f32 0.0, %v472
  %v474 = vpop.f32.mrf.mxu0
  %475 = vmatprep.mubr.bf16.mxu0 %v254
  %476 = vmatmul.mubr.bf16.gmra.mxu0 %v253
  %v477 = vpop.f32.mrf.mxu0
  %v478 = vadd.f32 0.0, %v477
  %v479 = vpop.f32.mrf.mxu0
  %v480 = vpop.f32.mrf.mxu0
  %v481 = vadd.f32 0.0, %v480
  %v482 = vpop.f32.mrf.mxu0
  %483 = vmatprep.mubr.bf16.mxu0 %v256
  %484 = vmatmul.mubr.bf16.gmra.mxu0 %v255
  %v485 = vpop.f32.mrf.mxu0
  %v486 = vadd.f32 0.0, %v485
  %v487 = vpop.f32.mrf.mxu0
  %v488 = vpop.f32.mrf.mxu0
  %v489 = vadd.f32 0.0, %v488
  %v490 = vpop.f32.mrf.mxu0
  %491 = vmatprep.mubr.bf16.mxu0 %v258
  %492 = vmatmul.mubr.bf16.gmra.mxu0 %v257
  %v493 = vpop.f32.mrf.mxu0
  %v494 = vadd.f32 0.0, %v493
  %v495 = vpop.f32.mrf.mxu0
  %v496 = vpop.f32.mrf.mxu0
  %v497 = vadd.f32 0.0, %v496
  %v498 = vpop.f32.mrf.mxu0
  %499 = vmatprep.mubr.bf16.mxu0 %v260
  %500 = vmatmul.mubr.bf16.gmra.mxu0 %v259
  %v501 = vpop.f32.mrf.mxu0
  %v502 = vadd.f32 0.0, %v501
  %v503 = vpop.f32.mrf.mxu0
  %v504 = vpop.f32.mrf.mxu0
  %v505 = vadd.f32 0.0, %v504
  %v506 = vpop.f32.mrf.mxu0
  %507 = vmatprep.mubr.bf16.mxu0 %v262
  %508 = vmatmul.mubr.bf16.gmra.mxu0 %v261
  %v509 = vpop.f32.mrf.mxu0
  %v510 = vadd.f32 0.0, %v509
  %v511 = vpop.f32.mrf.mxu0
  %v512 = vpop.f32.mrf.mxu0
  %v513 = vadd.f32 0.0, %v512
  %v514 = vpop.f32.mrf.mxu0
  %515 = vmatprep.mubr.bf16.mxu0 %v264
  %516 = vmatmul.mubr.bf16.gmra.mxu0 %v263
  %v517 = vpop.f32.mrf.mxu0
  %v518 = vadd.f32 0.0, %v517
  %v519 = vpop.f32.mrf.mxu0
  %v520 = vpop.f32.mrf.mxu0
  %v521 = vadd.f32 0.0, %v520
  %v522 = vpop.f32.mrf.mxu0
  %523 = vmatprep.mubr.bf16.mxu0 %v266
  %524 = vmatmul.mubr.bf16.gmra.mxu0 %v265
  %v525 = vpop.f32.mrf.mxu0
  %v526 = vadd.f32 0.0, %v525
  %v527 = vpop.f32.mrf.mxu0
  %v528 = vpop.f32.mrf.mxu0
  %v529 = vadd.f32 0.0, %v528
  %v530 = vpop.f32.mrf.mxu0
  %531 = vmatprep.mubr.bf16.mxu0 %v268
  %532 = vmatmul.mubr.bf16.gmra.mxu0 %v267
  %v533 = vpop.f32.mrf.mxu0
  %v534 = vadd.f32 0.0, %v533
  %v535 = vpop.f32.mrf.mxu0
  %v536 = vpop.f32.mrf.mxu0
  %v537 = vadd.f32 0.0, %v536
  %v538 = vpop.f32.mrf.mxu0
  %539 = vmatprep.mubr.bf16.mxu0 %v270
  %540 = vmatmul.mubr.bf16.gmra.mxu0 %v269
  %v541 = vpop.f32.mrf.mxu0
  %v542 = vadd.f32 0.0, %v541
  %v543 = vpop.f32.mrf.mxu0
  %v544 = vpop.f32.mrf.mxu0
  %v545 = vadd.f32 0.0, %v544
  %v546 = vpop.f32.mrf.mxu0
  %547 = vmatprep.mubr.bf16.mxu0 %v272
  %548 = vmatmul.mubr.bf16.gmra.mxu0 %v271
  %v549 = vpop.f32.mrf.mxu0
  %v550 = vadd.f32 0.0, %v549
  %v551 = vpop.f32.mrf.mxu0
  %v552 = vpop.f32.mrf.mxu0
  %v553 = vadd.f32 0.0, %v552
  %v554 = vpop.f32.mrf.mxu0
  %555 = vmatprep.mubr.bf16.mxu0 %v274
  %556 = vmatmul.mubr.bf16.gmra.mxu0 %v273
  %v557 = vpop.f32.mrf.mxu0
  %v558 = vadd.f32 0.0, %v557
  %v559 = vpop.f32.mrf.mxu0
  %v560 = vpop.f32.mrf.mxu0
  %v561 = vadd.f32 0.0, %v560
  %v562 = vpop.f32.mrf.mxu0
  %563 = vdwg.mxu0
  %v564 = vadd.f32 %v51, %v438
  %v565 = vadd.f32 %v52, %v441
  %v566 = vadd.f32 %v53, %v446
  %v567 = vadd.f32 %v54, %v449
  %v568 = vadd.f32 %v55, %v454
  %v569 = vadd.f32 %v56, %v457
  %v570 = vadd.f32 %v57, %v462
  %v571 = vadd.f32 %v58, %v465
  %v572 = vadd.f32 %v59, %v470
  %v573 = vadd.f32 %v60, %v473
  %v574 = vadd.f32 %v61, %v478
  %v575 = vadd.f32 %v62, %v481
  %v576 = vadd.f32 %v63, %v486
  %v577 = vadd.f32 %v64, %v489
  %v578 = vadd.f32 %v65, %v494
  %v579 = vadd.f32 %v66, %v497
  %v580 = vadd.f32 %v67, %v502
  %v581 = vadd.f32 %v68, %v505
  %v582 = vadd.f32 %v69, %v510
  %v583 = vadd.f32 %v70, %v513
  %v584 = vadd.f32 %v71, %v518
  %v585 = vadd.f32 %v72, %v521
  %v586 = vadd.f32 %v73, %v526
  %v587 = vadd.f32 %v74, %v529
  %v588 = vadd.f32 %v75, %v534
  %v589 = vadd.f32 %v76, %v537
  %v590 = vadd.f32 %v77, %v542
  %v591 = vadd.f32 %v78, %v545
  %v592 = vadd.f32 %v79, %v550
  %v593 = vadd.f32 %v80, %v553
  %v594 = vadd.f32 %v81, %v558
  %v595 = vadd.f32 %v82, %v561
  %596 = vst [vmem:[#allocation2] sm:$0xff] %v564
  %597 = vst [vmem:[#allocation2 + $0x8] sm:$0xff] %v565
  %598 = vst [vmem:[#allocation2 + $0x10] sm:$0xff] %v566
  %599 = vst [vmem:[#allocation2 + $0x18] sm:$0xff] %v567
  %600 = vst [vmem:[#allocation2 + $0x20] sm:$0xff] %v568
  %601 = vst [vmem:[#allocation2 + $0x28] sm:$0xff] %v569
  %602 = vst [vmem:[#allocation2 + $0x30] sm:$0xff] %v570
  %603 = vst [vmem:[#allocation2 + $0x38] sm:$0xff] %v571
  %604 = vst [vmem:[#allocation2 + $0x40] sm:$0xff] %v572
  %605 = vst [vmem:[#allocation2 + $0x48] sm:$0xff] %v573
  %606 = vst [vmem:[#allocation2 + $0x50] sm:$0xff] %v574
  %607 = vst [vmem:[#allocation2 + $0x58] sm:$0xff] %v575
  %608 = vst [vmem:[#allocation2 + $0x60] sm:$0xff] %v576
  %609 = vst [vmem:[#allocation2 + $0x68] sm:$0xff] %v577
  %610 = vst [vmem:[#allocation2 + $0x70] sm:$0xff] %v578
  %611 = vst [vmem:[#allocation2 + $0x78] sm:$0xff] %v579
  %612 = vst [vmem:[#allocation2 + $0x80] sm:$0xff] %v580
  %613 = vst [vmem:[#allocation2 + $0x88] sm:$0xff] %v581
  %614 = vst [vmem:[#allocation2 + $0x90] sm:$0xff] %v582
  %615 = vst [vmem:[#allocation2 + $0x98] sm:$0xff] %v583
  %616 = vst [vmem:[#allocation2 + $0xa0] sm:$0xff] %v584
  %617 = vst [vmem:[#allocation2 + $0xa8] sm:$0xff] %v585
  %618 = vst [vmem:[#allocation2 + $0xb0] sm:$0xff] %v586
  %619 = vst [vmem:[#allocation2 + $0xb8] sm:$0xff] %v587
  %620 = vst [vmem:[#allocation2 + $0xc0] sm:$0xff] %v588
  %621 = vst [vmem:[#allocation2 + $0xc8] sm:$0xff] %v589
  %622 = vst [vmem:[#allocation2 + $0xd0] sm:$0xff] %v590
  %623 = vst [vmem:[#allocation2 + $0xd8] sm:$0xff] %v591
  %624 = vst [vmem:[#allocation2 + $0xe0] sm:$0xff] %v592
  %625 = vst [vmem:[#allocation2 + $0xe8] sm:$0xff] %v593
  %626 = vst [vmem:[#allocation2 + $0xf0] sm:$0xff] %v594
  %627 = vst [vmem:[#allocation2 + $0xf8] sm:$0xff] %v595
  // Predicated region
  $region18: #{gae_forward.9} parent=0 // pred_check
    %p628 = pneg %p15
  $region19: #{gae_forward.9} parent=0 // pred_check_branch
    %630 = sbr.rel (%p628) target = $region21
  $region20: #{gae_forward.9} parent=0 // pred_region
    %v631 = vld [vmem:[#allocation2] sm:$0xff]
    %v632 = vld [vmem:[#allocation2 + $0x8] sm:$0xff]
    %v633 = vld [vmem:[#allocation2 + $0x10] sm:$0xff]
    %v634 = vld [vmem:[#allocation2 + $0x18] sm:$0xff]
    %v635 = vld [vmem:[#allocation2 + $0x20] sm:$0xff]
    %v636 = vld [vmem:[#allocation2 + $0x28] sm:$0xff]
    %v637 = vld [vmem:[#allocation2 + $0x30] sm:$0xff]
    %v638 = vld [vmem:[#allocation2 + $0x38] sm:$0xff]
    %v639 = vld [vmem:[#allocation2 + $0x40] sm:$0xff]
    %v640 = vld [vmem:[#allocation2 + $0x48] sm:$0xff]
    %v641 = vld [vmem:[#allocation2 + $0x50] sm:$0xff]
    %v642 = vld [vmem:[#allocation2 + $0x58] sm:$0xff]
    %v643 = vld [vmem:[#allocation2 + $0x60] sm:$0xff]
    %v644 = vld [vmem:[#allocation2 + $0x68] sm:$0xff]
    %v645 = vld [vmem:[#allocation2 + $0x70] sm:$0xff]
    %v646 = vld [vmem:[#allocation2 + $0x78] sm:$0xff]
    %v647 = vld [vmem:[#allocation2 + $0x80] sm:$0xff]
    %v648 = vld [vmem:[#allocation2 + $0x88] sm:$0xff]
    %v649 = vld [vmem:[#allocation2 + $0x90] sm:$0xff]
    %v650 = vld [vmem:[#allocation2 + $0x98] sm:$0xff]
    %v651 = vld [vmem:[#allocation2 + $0xa0] sm:$0xff]
    %v652 = vld [vmem:[#allocation2 + $0xa8] sm:$0xff]
    %v653 = vld [vmem:[#allocation2 + $0xb0] sm:$0xff]
    %v654 = vld [vmem:[#allocation2 + $0xb8] sm:$0xff]
    %v655 = vld [vmem:[#allocation2 + $0xc0] sm:$0xff]
    %v656 = vld [vmem:[#allocation2 + $0xc8] sm:$0xff]
    %v657 = vld [vmem:[#allocation2 + $0xd0] sm:$0xff]
    %v658 = vld [vmem:[#allocation2 + $0xd8] sm:$0xff]
    %v659 = vld [vmem:[#allocation2 + $0xe0] sm:$0xff]
    %v660 = vld [vmem:[#allocation2 + $0xe8] sm:$0xff]
    %v661 = vld [vmem:[#allocation2 + $0xf0] sm:$0xff]
    %v662 = vld [vmem:[#allocation2 + $0xf8] sm:$0xff]
    %v663 = vld [vmem:[%s2] sm:$0x1]
    %v665 = vlaneseq
    %v666 = vshrl.u32 %v665, 7
    %v667 = vsub.s32 0, %v666
    %v668 = vrot.slane %v663, %v667
    %v670 = vadd.f32 %v631, %v668
    %v671 = vadd.f32 %v632, %v668
    %v672 = vadd.f32 %v633, %v668
    %v673 = vadd.f32 %v634, %v668
    %v674 = vadd.f32 %v635, %v668
    %v675 = vadd.f32 %v636, %v668
    %v676 = vadd.f32 %v637, %v668
    %v677 = vadd.f32 %v638, %v668
    %v678 = vadd.f32 %v639, %v668
    %v679 = vadd.f32 %v640, %v668
    %v680 = vadd.f32 %v641, %v668
    %v681 = vadd.f32 %v642, %v668
    %v682 = vadd.f32 %v643, %v668
    %v683 = vadd.f32 %v644, %v668
    %v684 = vadd.f32 %v645, %v668
    %v685 = vadd.f32 %v646, %v668
    %v686 = vadd.f32 %v647, %v668
    %v687 = vadd.f32 %v648, %v668
    %v688 = vadd.f32 %v649, %v668
    %v689 = vadd.f32 %v650, %v668
    %v690 = vadd.f32 %v651, %v668
    %v691 = vadd.f32 %v652, %v668
    %v692 = vadd.f32 %v653, %v668
    %v693 = vadd.f32 %v654, %v668
    %v694 = vadd.f32 %v655, %v668
    %v695 = vadd.f32 %v656, %v668
    %v696 = vadd.f32 %v657, %v668
    %v697 = vadd.f32 %v658, %v668
    %v698 = vadd.f32 %v659, %v668
    %v699 = vadd.f32 %v660, %v668
    %v700 = vadd.f32 %v661, %v668
    %v701 = vadd.f32 %v662, %v668
    %702 = vst [vmem:[%s3] sm:$0xff] %v670
    %703 = vst [vmem:[%s3 + $0x8] sm:$0xff] %v671
    %704 = vst [vmem:[%s3 + $0x10] sm:$0xff] %v672
    %705 = vst [vmem:[%s3 + $0x18] sm:$0xff] %v673
    %706 = vst [vmem:[%s3 + $0x20] sm:$0xff] %v674
    %707 = vst [vmem:[%s3 + $0x28] sm:$0xff] %v675
    %708 = vst [vmem:[%s3 + $0x30] sm:$0xff] %v676
    %709 = vst [vmem:[%s3 + $0x38] sm:$0xff] %v677
    %710 = vst [vmem:[%s3 + $0x40] sm:$0xff] %v678
    %711 = vst [vmem:[%s3 + $0x48] sm:$0xff] %v679
    %712 = vst [vmem:[%s3 + $0x50] sm:$0xff] %v680
    %713 = vst [vmem:[%s3 + $0x58] sm:$0xff] %v681
    %714 = vst [vmem:[%s3 + $0x60] sm:$0xff] %v682
    %715 = vst [vmem:[%s3 + $0x68] sm:$0xff] %v683
    %716 = vst [vmem:[%s3 + $0x70] sm:$0xff] %v684
    %717 = vst [vmem:[%s3 + $0x78] sm:$0xff] %v685
    %718 = vst [vmem:[%s3 + $0x80] sm:$0xff] %v686
    %719 = vst [vmem:[%s3 + $0x88] sm:$0xff] %v687
    %720 = vst [vmem:[%s3 + $0x90] sm:$0xff] %v688
    %721 = vst [vmem:[%s3 + $0x98] sm:$0xff] %v689
    %722 = vst [vmem:[%s3 + $0xa0] sm:$0xff] %v690
    %723 = vst [vmem:[%s3 + $0xa8] sm:$0xff] %v691
    %724 = vst [vmem:[%s3 + $0xb0] sm:$0xff] %v692
    %725 = vst [vmem:[%s3 + $0xb8] sm:$0xff] %v693
    %726 = vst [vmem:[%s3 + $0xc0] sm:$0xff] %v694
    %727 = vst [vmem:[%s3 + $0xc8] sm:$0xff] %v695
    %728 = vst [vmem:[%s3 + $0xd0] sm:$0xff] %v696
    %729 = vst [vmem:[%s3 + $0xd8] sm:$0xff] %v697
    %730 = vst [vmem:[%s3 + $0xe0] sm:$0xff] %v698
    %731 = vst [vmem:[%s3 + $0xe8] sm:$0xff] %v699
    %732 = vst [vmem:[%s3 + $0xf0] sm:$0xff] %v700
    %733 = vst [vmem:[%s3 + $0xf8] sm:$0xff] %v701
  $region21: #{gae_forward.9} parent=0 // pred_fallthru
    _
  // Predicated region
  $region22: #{gae_forward.9} parent=0 // pred_check
    _
  $region23: #{gae_forward.9} parent=0 // pred_check_branch
    %735 = sbr.rel (0) target = $region25
  $region24: #{gae_forward.9} parent=0 // pred_region
    _
  $region25: #{gae_forward.9} parent=0 // pred_fallthru
    _
  // Predicated region
  $region26: #{gae_forward.9} parent=0 // pred_check
    _
  $region27: #{gae_forward.9} parent=0 // pred_check_branch
    %737 = sbr.rel (0) target = $region29
  $region28: #{gae_forward.9} parent=0 // pred_region
    _
  $region29: #{gae_forward.9} parent=0 // pred_fallthru
    _

// kernel: gae_forward.12
$region0: #{gae_forward.12}
  #allocation0 [shape = 'u32[]', space=smem, size = 0x4, offset = 0x4, fixed_abs, tag = 'smem constant byte address 0x4 - core index']
  #allocation1 [shape = 'u32[144,128]{1,0:T(1,128)}', space=vmem, size = 0x12000, scoped, tag = 'internal scratch']
  %s0 = inlined_call_operand.vmem [shape: f32[256,128], index: 0, kind: input, shape index: {}]
  %s1 = inlined_call_operand.vmem [shape: bf16[128,128], index: 1, kind: input, shape index: {}]
  %s2 = inlined_call_operand.vmem [shape: bf16[128,128], index: 2, kind: input, shape index: {}]
  %s3 = inlined_call_operand.vmem [shape: f32[256,128], index: 3, kind: output, shape index: {0}]
  %s4 = inlined_call_operand.vmem [shape: bf16[256,128], index: 4, kind: output, shape index: {1}]
  %5 = xla_tuple %s3, %s4
  %s6 = sld [smem:[#allocation0]]
  $region30: #{gae_forward.12} parent=0
    _
  %s8 = ssub.s32 1, %s6
  %s9 = scalar_select 0, %s8, %s6
  // Predicated region
  $region2: #{gae_forward.12} parent=0 // pred_check
    _
  $region3: #{gae_forward.12} parent=0 // pred_check_branch
    %11 = sbr.rel (0) target = $region5
  $region4: #{gae_forward.12} parent=0 // pred_region
    _
  $region5: #{gae_forward.12} parent=0 // pred_fallthru
    _
  // Predicated region
  $region6: #{gae_forward.12} parent=0 // pred_check
    _
  $region7: #{gae_forward.12} parent=0 // pred_check_branch
    %13 = sbr.rel (0) target = $region9
  $region8: #{gae_forward.12} parent=0 // pred_region
    _
  $region9: #{gae_forward.12} parent=0 // pred_fallthru
    _
  // Predicated region
  $region10: #{gae_forward.12} parent=0 // pred_check
    _
  $region11: #{gae_forward.12} parent=0 // pred_check_branch
    %15 = sbr.rel (0) target = $region13
  $region12: #{gae_forward.12} parent=0 // pred_region
    _
  $region13: #{gae_forward.12} parent=0 // pred_fallthru
    _
  %v17 = vld [vmem:[%s0] sm:$0xff]
  %v18 = vld [vmem:[%s0 + $0x8] sm:$0xff]
  %v19 = vld [vmem:[%s0 + $0x10] sm:$0xff]
  %v20 = vld [vmem:[%s0 + $0x18] sm:$0xff]
  %v21 = vld [vmem:[%s0 + $0x20] sm:$0xff]
  %v22 = vld [vmem:[%s0 + $0x28] sm:$0xff]
  %v23 = vld [vmem:[%s0 + $0x30] sm:$0xff]
  %v24 = vld [vmem:[%s0 + $0x38] sm:$0xff]
  %v25 = vld [vmem:[%s0 + $0x40] sm:$0xff]
  %v26 = vld [vmem:[%s0 + $0x48] sm:$0xff]
  %v27 = vld [vmem:[%s0 + $0x50] sm:$0xff]
  %v28 = vld [vmem:[%s0 + $0x58] sm:$0xff]
  %v29 = vld [vmem:[%s0 + $0x60] sm:$0xff]
  %v30 = vld [vmem:[%s0 + $0x68] sm:$0xff]
  %v31 = vld [vmem:[%s0 + $0x70] sm:$0xff]
  %v32 = vld [vmem:[%s0 + $0x78] sm:$0xff]
  %v33 = vld [vmem:[%s0 + $0x80] sm:$0xff]
  %v34 = vld [vmem:[%s0 + $0x88] sm:$0xff]
  %v35 = vld [vmem:[%s0 + $0x90] sm:$0xff]
  %v36 = vld [vmem:[%s0 + $0x98] sm:$0xff]
  %v37 = vld [vmem:[%s0 + $0xa0] sm:$0xff]
  %v38 = vld [vmem:[%s0 + $0xa8] sm:$0xff]
  %v39 = vld [vmem:[%s0 + $0xb0] sm:$0xff]
  %v40 = vld [vmem:[%s0 + $0xb8] sm:$0xff]
  %v41 = vld [vmem:[%s0 + $0xc0] sm:$0xff]
  %v42 = vld [vmem:[%s0 + $0xc8] sm:$0xff]
  %v43 = vld [vmem:[%s0 + $0xd0] sm:$0xff]
  %v44 = vld [vmem:[%s0 + $0xd8] sm:$0xff]
  %v45 = vld [vmem:[%s0 + $0xe0] sm:$0xff]
  %v46 = vld [vmem:[%s0 + $0xe8] sm:$0xff]
  %v47 = vld [vmem:[%s0 + $0xf0] sm:$0xff]
  %v48 = vld [vmem:[%s0 + $0xf8] sm:$0xff]
  %v49 = vpack.c.bf16 %v18, %v17
  %v50 = vpack.c.bf16 %v20, %v19
  %v51 = vpack.c.bf16 %v22, %v21
  %v52 = vpack.c.bf16 %v24, %v23
  %v53 = vpack.c.bf16 %v26, %v25
  %v54 = vpack.c.bf16 %v28, %v27
  %v55 = vpack.c.bf16 %v30, %v29
  %v56 = vpack.c.bf16 %v32, %v31
  %v57 = vpack.c.bf16 %v34, %v33
  %v58 = vpack.c.bf16 %v36, %v35
  %v59 = vpack.c.bf16 %v38, %v37
  %v60 = vpack.c.bf16 %v40, %v39
  %v61 = vpack.c.bf16 %v42, %v41
  %v62 = vpack.c.bf16 %v44, %v43
  %v63 = vpack.c.bf16 %v46, %v45
  %v64 = vpack.c.bf16 %v48, %v47
  %v65 = vld [vmem:[%s1] sm:$0xf]
  %v66 = vld [vmem:[%s1 + $0x4] sm:$0xf]
  %v67 = vld [vmem:[%s1 + $0x8] sm:$0xf]
  %v68 = vld [vmem:[%s1 + $0xc] sm:$0xf]
  %v69 = vld [vmem:[%s1 + $0x10] sm:$0xf]
  %v70 = vld [vmem:[%s1 + $0x14] sm:$0xf]
  %v71 = vld [vmem:[%s1 + $0x18] sm:$0xf]
  %v72 = vld [vmem:[%s1 + $0x1c] sm:$0xf]
  %v73 = vld [vmem:[%s1 + $0x20] sm:$0xf]
  %v74 = vld [vmem:[%s1 + $0x24] sm:$0xf]
  %v75 = vld [vmem:[%s1 + $0x28] sm:$0xf]
  %v76 = vld [vmem:[%s1 + $0x2c] sm:$0xf]
  %v77 = vld [vmem:[%s1 + $0x30] sm:$0xf]
  %v78 = vld [vmem:[%s1 + $0x34] sm:$0xf]
  %v79 = vld [vmem:[%s1 + $0x38] sm:$0xf]
  %v80 = vld [vmem:[%s1 + $0x3c] sm:$0xf]
  %v97 = vunpack.c.l.b16 %v65
  %v98 = vunpack.c.l.b16 %v66
  %v99 = vunpack.c.l.b16 %v67
  %v100 = vunpack.c.l.b16 %v68
  %v101 = vunpack.c.l.b16 %v69
  %v102 = vunpack.c.l.b16 %v70
  %v103 = vunpack.c.l.b16 %v71
  %v104 = vunpack.c.l.b16 %v72
  %v105 = vunpack.c.l.b16 %v73
  %v106 = vunpack.c.l.b16 %v74
  %v107 = vunpack.c.l.b16 %v75
  %v108 = vunpack.c.l.b16 %v76
  %v109 = vunpack.c.l.b16 %v77
  %v110 = vunpack.c.l.b16 %v78
  %v111 = vunpack.c.l.b16 %v79
  %v112 = vunpack.c.l.b16 %v80
  %v113 = vpack.c.b16 %v98, %v97
  %v114 = vpack.c.b16 %v100, %v99
  %v115 = vpack.c.b16 %v102, %v101
  %v116 = vpack.c.b16 %v104, %v103
  %v117 = vpack.c.b16 %v106, %v105
  %v118 = vpack.c.b16 %v108, %v107
  %v119 = vpack.c.b16 %v110, %v109
  %v120 = vpack.c.b16 %v112, %v111
  %129 = vmatprep.subr.bf16.mxu0 0
  %130 = vmatpush1.bf16.msra.mxu0 %v120
  %131 = vmatprep.subr.bf16.mxu0 0
  %132 = vmatpush1.bf16.msra.mxu0 %v119
  %133 = vmatprep.subr.bf16.mxu0 0
  %134 = vmatpush1.bf16.msra.mxu0 %v118
  %135 = vmatprep.subr.bf16.mxu0 0
  %136 = vmatpush1.bf16.msra.mxu0 %v117
  %137 = vmatprep.subr.bf16.mxu0 0
  %138 = vmatpush1.bf16.msra.mxu0 %v116
  %139 = vmatprep.subr.bf16.mxu0 0
  %140 = vmatpush1.bf16.msra.mxu0 %v115
  %141 = vmatprep.subr.bf16.mxu0 0
  %142 = vmatpush1.bf16.msra.mxu0 %v114
  %143 = vmatprep.subr.bf16.mxu0 0
  %144 = vmatpush1.bf16.msra.mxu0 %v113
  %145 = vmatprep.subr.bf16.mxu0 0
  %146 = vmatpush2.bf16.msra.mxu0 0
  %147 = vmatprep.subr.bf16.mxu0 0
  %148 = vmatpush2.bf16.msra.mxu0 0
  %149 = vmatprep.subr.bf16.mxu0 0
  %150 = vmatpush2.bf16.msra.mxu0 0
  %151 = vmatprep.subr.bf16.mxu0 0
  %152 = vmatpush2.bf16.msra.mxu0 0
  %153 = vmatprep.subr.bf16.mxu0 0
  %154 = vmatpush2.bf16.msra.mxu0 0
  %155 = vmatprep.subr.bf16.mxu0 0
  %156 = vmatpush2.bf16.msra.mxu0 0
  %157 = vmatprep.subr.bf16.mxu0 0
  %158 = vmatpush2.bf16.msra.mxu0 0
  %159 = vmatprep.subr.bf16.mxu0 0
  %160 = vmatpush2.bf16.msra.mxu0 0
  %161 = vmatprep.mubr.bf16.mxu0 0
  %162 = vmatmul.mubr.bf16.gmra.mxu0 %v49
  %v163 = vpop.f32.mrf.mxu0
  %v164 = vadd.f32 0.0, %v163
  %v165 = vpop.f32.mrf.mxu0
  %v166 = vpop.f32.mrf.mxu0
  %v167 = vadd.f32 0.0, %v166
  %v168 = vpop.f32.mrf.mxu0
  %169 = vmatprep.mubr.bf16.mxu0 0
  %170 = vmatmul.mubr.bf16.gmra.mxu0 %v50
  %v171 = vpop.f32.mrf.mxu0
  %v172 = vadd.f32 0.0, %v171
  %v173 = vpop.f32.mrf.mxu0
  %v174 = vpop.f32.mrf.mxu0
  %v175 = vadd.f32 0.0, %v174
  %v176 = vpop.f32.mrf.mxu0
  %177 = vmatprep.mubr.bf16.mxu0 0
  %178 = vmatmul.mubr.bf16.gmra.mxu0 %v51
  %v179 = vpop.f32.mrf.mxu0
  %v180 = vadd.f32 0.0, %v179
  %v181 = vpop.f32.mrf.mxu0
  %v182 = vpop.f32.mrf.mxu0
  %v183 = vadd.f32 0.0, %v182
  %v184 = vpop.f32.mrf.mxu0
  %185 = vmatprep.mubr.bf16.mxu0 0
  %186 = vmatmul.mubr.bf16.gmra.mxu0 %v52
  %v187 = vpop.f32.mrf.mxu0
  %v188 = vadd.f32 0.0, %v187
  %v189 = vpop.f32.mrf.mxu0
  %v190 = vpop.f32.mrf.mxu0
  %v191 = vadd.f32 0.0, %v190
  %v192 = vpop.f32.mrf.mxu0
  %193 = vmatprep.mubr.bf16.mxu0 0
  %194 = vmatmul.mubr.bf16.gmra.mxu0 %v53
  %v195 = vpop.f32.mrf.mxu0
  %v196 = vadd.f32 0.0, %v195
  %v197 = vpop.f32.mrf.mxu0
  %v198 = vpop.f32.mrf.mxu0
  %v199 = vadd.f32 0.0, %v198
  %v200 = vpop.f32.mrf.mxu0
  %201 = vmatprep.mubr.bf16.mxu0 0
  %202 = vmatmul.mubr.bf16.gmra.mxu0 %v54
  %v203 = vpop.f32.mrf.mxu0
  %v204 = vadd.f32 0.0, %v203
  %v205 = vpop.f32.mrf.mxu0
  %v206 = vpop.f32.mrf.mxu0
  %v207 = vadd.f32 0.0, %v206
  %v208 = vpop.f32.mrf.mxu0
  %209 = vmatprep.mubr.bf16.mxu0 0
  %210 = vmatmul.mubr.bf16.gmra.mxu0 %v55
  %v211 = vpop.f32.mrf.mxu0
  %v212 = vadd.f32 0.0, %v211
  %v213 = vpop.f32.mrf.mxu0
  %v214 = vpop.f32.mrf.mxu0
  %v215 = vadd.f32 0.0, %v214
  %v216 = vpop.f32.mrf.mxu0
  %217 = vmatprep.mubr.bf16.mxu0 0
  %218 = vmatmul.mubr.bf16.gmra.mxu0 %v56
  %v219 = vpop.f32.mrf.mxu0
  %v220 = vadd.f32 0.0, %v219
  %v221 = vpop.f32.mrf.mxu0
  %v222 = vpop.f32.mrf.mxu0
  %v223 = vadd.f32 0.0, %v222
  %v224 = vpop.f32.mrf.mxu0
  %225 = vmatprep.mubr.bf16.mxu0 0
  %226 = vmatmul.mubr.bf16.gmra.mxu0 %v57
  %v227 = vpop.f32.mrf.mxu0
  %v228 = vadd.f32 0.0, %v227
  %v229 = vpop.f32.mrf.mxu0
  %v230 = vpop.f32.mrf.mxu0
  %v231 = vadd.f32 0.0, %v230
  %v232 = vpop.f32.mrf.mxu0
  %233 = vmatprep.mubr.bf16.mxu0 0
  %234 = vmatmul.mubr.bf16.gmra.mxu0 %v58
  %v235 = vpop.f32.mrf.mxu0
  %v236 = vadd.f32 0.0, %v235
  %v237 = vpop.f32.mrf.mxu0
  %v238 = vpop.f32.mrf.mxu0
  %v239 = vadd.f32 0.0, %v238
  %v240 = vpop.f32.mrf.mxu0
  %241 = vmatprep.mubr.bf16.mxu0 0
  %242 = vmatmul.mubr.bf16.gmra.mxu0 %v59
  %v243 = vpop.f32.mrf.mxu0
  %v244 = vadd.f32 0.0, %v243
  %v245 = vpop.f32.mrf.mxu0
  %v246 = vpop.f32.mrf.mxu0
  %v247 = vadd.f32 0.0, %v246
  %v248 = vpop.f32.mrf.mxu0
  %249 = vmatprep.mubr.bf16.mxu0 0
  %250 = vmatmul.mubr.bf16.gmra.mxu0 %v60
  %v251 = vpop.f32.mrf.mxu0
  %v252 = vadd.f32 0.0, %v251
  %v253 = vpop.f32.mrf.mxu0
  %v254 = vpop.f32.mrf.mxu0
  %v255 = vadd.f32 0.0, %v254
  %v256 = vpop.f32.mrf.mxu0
  %257 = vmatprep.mubr.bf16.mxu0 0
  %258 = vmatmul.mubr.bf16.gmra.mxu0 %v61
  %v259 = vpop.f32.mrf.mxu0
  %v260 = vadd.f32 0.0, %v259
  %v261 = vpop.f32.mrf.mxu0
  %v262 = vpop.f32.mrf.mxu0
  %v263 = vadd.f32 0.0, %v262
  %v264 = vpop.f32.mrf.mxu0
  %265 = vmatprep.mubr.bf16.mxu0 0
  %266 = vmatmul.mubr.bf16.gmra.mxu0 %v62
  %v267 = vpop.f32.mrf.mxu0
  %v268 = vadd.f32 0.0, %v267
  %v269 = vpop.f32.mrf.mxu0
  %v270 = vpop.f32.mrf.mxu0
  %v271 = vadd.f32 0.0, %v270
  %v272 = vpop.f32.mrf.mxu0
  %273 = vmatprep.mubr.bf16.mxu0 0
  %274 = vmatmul.mubr.bf16.gmra.mxu0 %v63
  %v275 = vpop.f32.mrf.mxu0
  %v276 = vadd.f32 0.0, %v275
  %v277 = vpop.f32.mrf.mxu0
  %v278 = vpop.f32.mrf.mxu0
  %v279 = vadd.f32 0.0, %v278
  %v280 = vpop.f32.mrf.mxu0
  %281 = vmatprep.mubr.bf16.mxu0 0
  %282 = vmatmul.mubr.bf16.gmra.mxu0 %v64
  %v283 = vpop.f32.mrf.mxu0
  %v284 = vadd.f32 0.0, %v283
  %v285 = vpop.f32.mrf.mxu0
  %v286 = vpop.f32.mrf.mxu0
  %v287 = vadd.f32 0.0, %v286
  %v288 = vpop.f32.mrf.mxu0
  %289 = vdwg.mxu0
  %290 = vst [vmem:[%s3] sm:$0xff] %v164
  %291 = vst [vmem:[%s3 + $0x8] sm:$0xff] %v167
  %292 = vst [vmem:[%s3 + $0x10] sm:$0xff] %v172
  %293 = vst [vmem:[%s3 + $0x18] sm:$0xff] %v175
  %294 = vst [vmem:[%s3 + $0x20] sm:$0xff] %v180
  %295 = vst [vmem:[%s3 + $0x28] sm:$0xff] %v183
  %296 = vst [vmem:[%s3 + $0x30] sm:$0xff] %v188
  %297 = vst [vmem:[%s3 + $0x38] sm:$0xff] %v191
  %298 = vst [vmem:[%s3 + $0x40] sm:$0xff] %v196
  %299 = vst [vmem:[%s3 + $0x48] sm:$0xff] %v199
  %300 = vst [vmem:[%s3 + $0x50] sm:$0xff] %v204
  %301 = vst [vmem:[%s3 + $0x58] sm:$0xff] %v207
  %302 = vst [vmem:[%s3 + $0x60] sm:$0xff] %v212
  %303 = vst [vmem:[%s3 + $0x68] sm:$0xff] %v215
  %304 = vst [vmem:[%s3 + $0x70] sm:$0xff] %v220
  %305 = vst [vmem:[%s3 + $0x78] sm:$0xff] %v223
  %306 = vst [vmem:[%s3 + $0x80] sm:$0xff] %v228
  %307 = vst [vmem:[%s3 + $0x88] sm:$0xff] %v231
  %308 = vst [vmem:[%s3 + $0x90] sm:$0xff] %v236
  %309 = vst [vmem:[%s3 + $0x98] sm:$0xff] %v239
  %310 = vst [vmem:[%s3 + $0xa0] sm:$0xff] %v244
  %311 = vst [vmem:[%s3 + $0xa8] sm:$0xff] %v247
  %312 = vst [vmem:[%s3 + $0xb0] sm:$0xff] %v252
  %313 = vst [vmem:[%s3 + $0xb8] sm:$0xff] %v255
  %314 = vst [vmem:[%s3 + $0xc0] sm:$0xff] %v260
  %315 = vst [vmem:[%s3 + $0xc8] sm:$0xff] %v263
  %316 = vst [vmem:[%s3 + $0xd0] sm:$0xff] %v268
  %317 = vst [vmem:[%s3 + $0xd8] sm:$0xff] %v271
  %318 = vst [vmem:[%s3 + $0xe0] sm:$0xff] %v276
  %319 = vst [vmem:[%s3 + $0xe8] sm:$0xff] %v279
  %320 = vst [vmem:[%s3 + $0xf0] sm:$0xff] %v284
  %321 = vst [vmem:[%s3 + $0xf8] sm:$0xff] %v287
  %v322 = vpack.c.bf16 %v167, %v164
  %v323 = vpack.c.bf16 %v175, %v172
  %v324 = vpack.c.bf16 %v183, %v180
  %v325 = vpack.c.bf16 %v191, %v188
  %v326 = vpack.c.bf16 %v199, %v196
  %v327 = vpack.c.bf16 %v207, %v204
  %v328 = vpack.c.bf16 %v215, %v212
  %v329 = vpack.c.bf16 %v223, %v220
  %v330 = vpack.c.bf16 %v231, %v228
  %v331 = vpack.c.bf16 %v239, %v236
  %v332 = vpack.c.bf16 %v247, %v244
  %v333 = vpack.c.bf16 %v255, %v252
  %v334 = vpack.c.bf16 %v263, %v260
  %v335 = vpack.c.bf16 %v271, %v268
  %v336 = vpack.c.bf16 %v279, %v276
  %v337 = vpack.c.bf16 %v287, %v284
  %v338 = vld [vmem:[%s2] sm:$0xf]
  %v339 = vld [vmem:[%s2 + $0x4] sm:$0xf]
  %v340 = vld [vmem:[%s2 + $0x8] sm:$0xf]
  %v341 = vld [vmem:[%s2 + $0xc] sm:$0xf]
  %v342 = vld [vmem:[%s2 + $0x10] sm:$0xf]
  %v343 = vld [vmem:[%s2 + $0x14] sm:$0xf]
  %v344 = vld [vmem:[%s2 + $0x18] sm:$0xf]
  %v345 = vld [vmem:[%s2 + $0x1c] sm:$0xf]
  %v346 = vld [vmem:[%s2 + $0x20] sm:$0xf]
  %v347 = vld [vmem:[%s2 + $0x24] sm:$0xf]
  %v348 = vld [vmem:[%s2 + $0x28] sm:$0xf]
  %v349 = vld [vmem:[%s2 + $0x2c] sm:$0xf]
  %v350 = vld [vmem:[%s2 + $0x30] sm:$0xf]
  %v351 = vld [vmem:[%s2 + $0x34] sm:$0xf]
  %v352 = vld [vmem:[%s2 + $0x38] sm:$0xf]
  %v353 = vld [vmem:[%s2 + $0x3c] sm:$0xf]
  %v370 = vunpack.c.l.b16 %v338
  %v371 = vunpack.c.l.b16 %v339
  %v372 = vunpack.c.l.b16 %v340
  %v373 = vunpack.c.l.b16 %v341
  %v374 = vunpack.c.l.b16 %v342
  %v375 = vunpack.c.l.b16 %v343
  %v376 = vunpack.c.l.b16 %v344
  %v377 = vunpack.c.l.b16 %v345
  %v378 = vunpack.c.l.b16 %v346
  %v379 = vunpack.c.l.b16 %v347
  %v380 = vunpack.c.l.b16 %v348
  %v381 = vunpack.c.l.b16 %v349
  %v382 = vunpack.c.l.b16 %v350
  %v383 = vunpack.c.l.b16 %v351
  %v384 = vunpack.c.l.b16 %v352
  %v385 = vunpack.c.l.b16 %v353
  %v386 = vpack.c.b16 %v371, %v370
  %v387 = vpack.c.b16 %v373, %v372
  %v388 = vpack.c.b16 %v375, %v374
  %v389 = vpack.c.b16 %v377, %v376
  %v390 = vpack.c.b16 %v379, %v378
  %v391 = vpack.c.b16 %v381, %v380
  %v392 = vpack.c.b16 %v383, %v382
  %v393 = vpack.c.b16 %v385, %v384
  %402 = vmatprep.subr.bf16.mxu0 0
  %403 = vmatpush1.bf16.msra.mxu0 %v393
  %404 = vmatprep.subr.bf16.mxu0 0
  %405 = vmatpush1.bf16.msra.mxu0 %v392
  %406 = vmatprep.subr.bf16.mxu0 0
  %407 = vmatpush1.bf16.msra.mxu0 %v391
  %408 = vmatprep.subr.bf16.mxu0 0
  %409 = vmatpush1.bf16.msra.mxu0 %v390
  %410 = vmatprep.subr.bf16.mxu0 0
  %411 = vmatpush1.bf16.msra.mxu0 %v389
  %412 = vmatprep.subr.bf16.mxu0 0
  %413 = vmatpush1.bf16.msra.mxu0 %v388
  %414 = vmatprep.subr.bf16.mxu0 0
  %415 = vmatpush1.bf16.msra.mxu0 %v387
  %416 = vmatprep.subr.bf16.mxu0 0
  %417 = vmatpush1.bf16.msra.mxu0 %v386
  %418 = vmatprep.subr.bf16.mxu0 0
  %419 = vmatpush2.bf16.msra.mxu0 0
  %420 = vmatprep.subr.bf16.mxu0 0
  %421 = vmatpush2.bf16.msra.mxu0 0
  %422 = vmatprep.subr.bf16.mxu0 0
  %423 = vmatpush2.bf16.msra.mxu0 0
  %424 = vmatprep.subr.bf16.mxu0 0
  %425 = vmatpush2.bf16.msra.mxu0 0
  %426 = vmatprep.subr.bf16.mxu0 0
  %427 = vmatpush2.bf16.msra.mxu0 0
  %428 = vmatprep.subr.bf16.mxu0 0
  %429 = vmatpush2.bf16.msra.mxu0 0
  %430 = vmatprep.subr.bf16.mxu0 0
  %431 = vmatpush2.bf16.msra.mxu0 0
  %432 = vmatprep.subr.bf16.mxu0 0
  %433 = vmatpush2.bf16.msra.mxu0 0
  %434 = vmatprep.mubr.bf16.mxu0 0
  %435 = vmatmul.mubr.bf16.gmra.mxu0 %v322
  %v436 = vpop.f32.mrf.mxu0
  %v437 = vadd.f32 0.0, %v436
  %v438 = vpop.f32.mrf.mxu0
  %v439 = vpop.f32.mrf.mxu0
  %v440 = vadd.f32 0.0, %v439
  %v441 = vpop.f32.mrf.mxu0
  %442 = vmatprep.mubr.bf16.mxu0 0
  %443 = vmatmul.mubr.bf16.gmra.mxu0 %v323
  %v444 = vpop.f32.mrf.mxu0
  %v445 = vadd.f32 0.0, %v444
  %v446 = vpop.f32.mrf.mxu0
  %v447 = vpop.f32.mrf.mxu0
  %v448 = vadd.f32 0.0, %v447
  %v449 = vpop.f32.mrf.mxu0
  %450 = vmatprep.mubr.bf16.mxu0 0
  %451 = vmatmul.mubr.bf16.gmra.mxu0 %v324
  %v452 = vpop.f32.mrf.mxu0
  %v453 = vadd.f32 0.0, %v452
  %v454 = vpop.f32.mrf.mxu0
  %v455 = vpop.f32.mrf.mxu0
  %v456 = vadd.f32 0.0, %v455
  %v457 = vpop.f32.mrf.mxu0
  %458 = vmatprep.mubr.bf16.mxu0 0
  %459 = vmatmul.mubr.bf16.gmra.mxu0 %v325
  %v460 = vpop.f32.mrf.mxu0
  %v461 = vadd.f32 0.0, %v460
  %v462 = vpop.f32.mrf.mxu0
  %v463 = vpop.f32.mrf.mxu0
  %v464 = vadd.f32 0.0, %v463
  %v465 = vpop.f32.mrf.mxu0
  %466 = vmatprep.mubr.bf16.mxu0 0
  %467 = vmatmul.mubr.bf16.gmra.mxu0 %v326
  %v468 = vpop.f32.mrf.mxu0
  %v469 = vadd.f32 0.0, %v468
  %v470 = vpop.f32.mrf.mxu0
  %v471 = vpop.f32.mrf.mxu0
  %v472 = vadd.f32 0.0, %v471
  %v473 = vpop.f32.mrf.mxu0
  %474 = vmatprep.mubr.bf16.mxu0 0
  %475 = vmatmul.mubr.bf16.gmra.mxu0 %v327
  %v476 = vpop.f32.mrf.mxu0
  %v477 = vadd.f32 0.0, %v476
  %v478 = vpop.f32.mrf.mxu0
  %v479 = vpop.f32.mrf.mxu0
  %v480 = vadd.f32 0.0, %v479
  %v481 = vpop.f32.mrf.mxu0
  %482 = vmatprep.mubr.bf16.mxu0 0
  %483 = vmatmul.mubr.bf16.gmra.mxu0 %v328
  %v484 = vpop.f32.mrf.mxu0
  %v485 = vadd.f32 0.0, %v484
  %v486 = vpop.f32.mrf.mxu0
  %v487 = vpop.f32.mrf.mxu0
  %v488 = vadd.f32 0.0, %v487
  %v489 = vpop.f32.mrf.mxu0
  %490 = vmatprep.mubr.bf16.mxu0 0
  %491 = vmatmul.mubr.bf16.gmra.mxu0 %v329
  %v492 = vpop.f32.mrf.mxu0
  %v493 = vadd.f32 0.0, %v492
  %v494 = vpop.f32.mrf.mxu0
  %v495 = vpop.f32.mrf.mxu0
  %v496 = vadd.f32 0.0, %v495
  %v497 = vpop.f32.mrf.mxu0
  %498 = vmatprep.mubr.bf16.mxu0 0
  %499 = vmatmul.mubr.bf16.gmra.mxu0 %v330
  %v500 = vpop.f32.mrf.mxu0
  %v501 = vadd.f32 0.0, %v500
  %v502 = vpop.f32.mrf.mxu0
  %v503 = vpop.f32.mrf.mxu0
  %v504 = vadd.f32 0.0, %v503
  %v505 = vpop.f32.mrf.mxu0
  %506 = vmatprep.mubr.bf16.mxu0 0
  %507 = vmatmul.mubr.bf16.gmra.mxu0 %v331
  %v508 = vpop.f32.mrf.mxu0
  %v509 = vadd.f32 0.0, %v508
  %v510 = vpop.f32.mrf.mxu0
  %v511 = vpop.f32.mrf.mxu0
  %v512 = vadd.f32 0.0, %v511
  %v513 = vpop.f32.mrf.mxu0
  %514 = vmatprep.mubr.bf16.mxu0 0
  %515 = vmatmul.mubr.bf16.gmra.mxu0 %v332
  %v516 = vpop.f32.mrf.mxu0
  %v517 = vadd.f32 0.0, %v516
  %v518 = vpop.f32.mrf.mxu0
  %v519 = vpop.f32.mrf.mxu0
  %v520 = vadd.f32 0.0, %v519
  %v521 = vpop.f32.mrf.mxu0
  %522 = vmatprep.mubr.bf16.mxu0 0
  %523 = vmatmul.mubr.bf16.gmra.mxu0 %v333
  %v524 = vpop.f32.mrf.mxu0
  %v525 = vadd.f32 0.0, %v524
  %v526 = vpop.f32.mrf.mxu0
  %v527 = vpop.f32.mrf.mxu0
  %v528 = vadd.f32 0.0, %v527
  %v529 = vpop.f32.mrf.mxu0
  %530 = vmatprep.mubr.bf16.mxu0 0
  %531 = vmatmul.mubr.bf16.gmra.mxu0 %v334
  %v532 = vpop.f32.mrf.mxu0
  %v533 = vadd.f32 0.0, %v532
  %v534 = vpop.f32.mrf.mxu0
  %v535 = vpop.f32.mrf.mxu0
  %v536 = vadd.f32 0.0, %v535
  %v537 = vpop.f32.mrf.mxu0
  %538 = vmatprep.mubr.bf16.mxu0 0
  %539 = vmatmul.mubr.bf16.gmra.mxu0 %v335
  %v540 = vpop.f32.mrf.mxu0
  %v541 = vadd.f32 0.0, %v540
  %v542 = vpop.f32.mrf.mxu0
  %v543 = vpop.f32.mrf.mxu0
  %v544 = vadd.f32 0.0, %v543
  %v545 = vpop.f32.mrf.mxu0
  %546 = vmatprep.mubr.bf16.mxu0 0
  %547 = vmatmul.mubr.bf16.gmra.mxu0 %v336
  %v548 = vpop.f32.mrf.mxu0
  %v549 = vadd.f32 0.0, %v548
  %v550 = vpop.f32.mrf.mxu0
  %v551 = vpop.f32.mrf.mxu0
  %v552 = vadd.f32 0.0, %v551
  %v553 = vpop.f32.mrf.mxu0
  %554 = vmatprep.mubr.bf16.mxu0 0
  %555 = vmatmul.mubr.bf16.gmra.mxu0 %v337
  %v556 = vpop.f32.mrf.mxu0
  %v557 = vadd.f32 0.0, %v556
  %v558 = vpop.f32.mrf.mxu0
  %v559 = vpop.f32.mrf.mxu0
  %v560 = vadd.f32 0.0, %v559
  %v561 = vpop.f32.mrf.mxu0
  %562 = vdwg.mxu0
  %v563 = vpack.c.bf16 %v440, %v437
  %v564 = vpack.c.bf16 %v448, %v445
  %v565 = vpack.c.bf16 %v456, %v453
  %v566 = vpack.c.bf16 %v464, %v461
  %v567 = vpack.c.bf16 %v472, %v469
  %v568 = vpack.c.bf16 %v480, %v477
  %v569 = vpack.c.bf16 %v488, %v485
  %v570 = vpack.c.bf16 %v496, %v493
  %v571 = vpack.c.bf16 %v504, %v501
  %v572 = vpack.c.bf16 %v512, %v509
  %v573 = vpack.c.bf16 %v520, %v517
  %v574 = vpack.c.bf16 %v528, %v525
  %v575 = vpack.c.bf16 %v536, %v533
  %v576 = vpack.c.bf16 %v544, %v541
  %v577 = vpack.c.bf16 %v552, %v549
  %v578 = vpack.c.bf16 %v560, %v557
  %v595 = vunpack.c.l.b16 %v563
  %v596 = vunpack.c.h.b16 %v563
  %v597 = vunpack.c.l.b16 %v564
  %v598 = vunpack.c.h.b16 %v564
  %v599 = vunpack.c.l.b16 %v565
  %v600 = vunpack.c.h.b16 %v565
  %v601 = vunpack.c.l.b16 %v566
  %v602 = vunpack.c.h.b16 %v566
  %v603 = vunpack.c.l.b16 %v567
  %v604 = vunpack.c.h.b16 %v567
  %v605 = vunpack.c.l.b16 %v568
  %v606 = vunpack.c.h.b16 %v568
  %v607 = vunpack.c.l.b16 %v569
  %v608 = vunpack.c.h.b16 %v569
  %v609 = vunpack.c.l.b16 %v570
  %v610 = vunpack.c.h.b16 %v570
  %v611 = vunpack.c.l.b16 %v571
  %v612 = vunpack.c.h.b16 %v571
  %v613 = vunpack.c.l.b16 %v572
  %v614 = vunpack.c.h.b16 %v572
  %v615 = vunpack.c.l.b16 %v573
  %v616 = vunpack.c.h.b16 %v573
  %v617 = vunpack.c.l.b16 %v574
  %v618 = vunpack.c.h.b16 %v574
  %v619 = vunpack.c.l.b16 %v575
  %v620 = vunpack.c.h.b16 %v575
  %v621 = vunpack.c.l.b16 %v576
  %v622 = vunpack.c.h.b16 %v576
  %v623 = vunpack.c.l.b16 %v577
  %v624 = vunpack.c.h.b16 %v577
  %v625 = vunpack.c.l.b16 %v578
  %v626 = vunpack.c.h.b16 %v578
  %v627 = vpack.c.b16 %v595, %v595
  %v628 = vpack.c.b16 %v596, %v596
  %v629 = vpack.c.b16 %v597, %v597
  %v630 = vpack.c.b16 %v598, %v598
  %v631 = vpack.c.b16 %v599, %v599
  %v632 = vpack.c.b16 %v600, %v600
  %v633 = vpack.c.b16 %v601, %v601
  %v634 = vpack.c.b16 %v602, %v602
  %v635 = vpack.c.b16 %v603, %v603
  %v636 = vpack.c.b16 %v604, %v604
  %v637 = vpack.c.b16 %v605, %v605
  %v638 = vpack.c.b16 %v606, %v606
  %v639 = vpack.c.b16 %v607, %v607
  %v640 = vpack.c.b16 %v608, %v608
  %v641 = vpack.c.b16 %v609, %v609
  %v642 = vpack.c.b16 %v610, %v610
  %v643 = vpack.c.b16 %v611, %v611
  %v644 = vpack.c.b16 %v612, %v612
  %v645 = vpack.c.b16 %v613, %v613
  %v646 = vpack.c.b16 %v614, %v614
  %v647 = vpack.c.b16 %v615, %v615
  %v648 = vpack.c.b16 %v616, %v616
  %v649 = vpack.c.b16 %v617, %v617
  %v650 = vpack.c.b16 %v618, %v618
  %v651 = vpack.c.b16 %v619, %v619
  %v652 = vpack.c.b16 %v620, %v620
  %v653 = vpack.c.b16 %v621, %v621
  %v654 = vpack.c.b16 %v622, %v622
  %v655 = vpack.c.b16 %v623, %v623
  %v656 = vpack.c.b16 %v624, %v624
  %v657 = vpack.c.b16 %v625, %v625
  %v658 = vpack.c.b16 %v626, %v626
  %691 = vst [vmem:[%s4] sm:$0xf] %v627
  %692 = vst [vmem:[%s4 + $0x4] sm:$0xf] %v628
  %693 = vst [vmem:[%s4 + $0x8] sm:$0xf] %v629
  %694 = vst [vmem:[%s4 + $0xc] sm:$0xf] %v630
  %695 = vst [vmem:[%s4 + $0x10] sm:$0xf] %v631
  %696 = vst [vmem:[%s4 + $0x14] sm:$0xf] %v632
  %697 = vst [vmem:[%s4 + $0x18] sm:$0xf] %v633
  %698 = vst [vmem:[%s4 + $0x1c] sm:$0xf] %v634
  %699 = vst [vmem:[%s4 + $0x20] sm:$0xf] %v635
  %700 = vst [vmem:[%s4 + $0x24] sm:$0xf] %v636
  %701 = vst [vmem:[%s4 + $0x28] sm:$0xf] %v637
  %702 = vst [vmem:[%s4 + $0x2c] sm:$0xf] %v638
  %703 = vst [vmem:[%s4 + $0x30] sm:$0xf] %v639
  %704 = vst [vmem:[%s4 + $0x34] sm:$0xf] %v640
  %705 = vst [vmem:[%s4 + $0x38] sm:$0xf] %v641
  %706 = vst [vmem:[%s4 + $0x3c] sm:$0xf] %v642
  %707 = vst [vmem:[%s4 + $0x40] sm:$0xf] %v643
  %708 = vst [vmem:[%s4 + $0x44] sm:$0xf] %v644
  %709 = vst [vmem:[%s4 + $0x48] sm:$0xf] %v645
  %710 = vst [vmem:[%s4 + $0x4c] sm:$0xf] %v646
  %711 = vst [vmem:[%s4 + $0x50] sm:$0xf] %v647
  %712 = vst [vmem:[%s4 + $0x54] sm:$0xf] %v648
  %713 = vst [vmem:[%s4 + $0x58] sm:$0xf] %v649
  %714 = vst [vmem:[%s4 + $0x5c] sm:$0xf] %v650
  %715 = vst [vmem:[%s4 + $0x60] sm:$0xf] %v651
  %716 = vst [vmem:[%s4 + $0x64] sm:$0xf] %v652
  %717 = vst [vmem:[%s4 + $0x68] sm:$0xf] %v653
  %718 = vst [vmem:[%s4 + $0x6c] sm:$0xf] %v654
  %719 = vst [vmem:[%s4 + $0x70] sm:$0xf] %v655
  %720 = vst [vmem:[%s4 + $0x74] sm:$0xf] %v656
  %721 = vst [vmem:[%s4 + $0x78] sm:$0xf] %v657
  %722 = vst [vmem:[%s4 + $0x7c] sm:$0xf] %v658
  // Predicated region
  $region14: #{gae_forward.12} parent=0 // pred_check
    _
  $region15: #{gae_forward.12} parent=0 // pred_check_branch
    %724 = sbr.rel (0) target = $region17
  $region16: #{gae_forward.12} parent=0 // pred_region
    _
  $region17: #{gae_forward.12} parent=0 // pred_fallthru
    _
  // Predicated region
  $region18: #{gae_forward.12} parent=0 // pred_check
    _
  $region19: #{gae_forward.12} parent=0 // pred_check_branch
    %726 = sbr.rel (0) target = $region21
  $region20: #{gae_forward.12} parent=0 // pred_region
    _
  $region21: #{gae_forward.12} parent=0 // pred_fallthru
    _
  // Predicated region
  $region22: #{gae_forward.12} parent=0 // pred_check
    _
  $region23: #{gae_forward.12} parent=0 // pred_check_branch
    %728 = sbr.rel (0) target = $region25
  $region24: #{gae_forward.12} parent=0 // pred_region
    _
  $region25: #{gae_forward.12} parent=0 // pred_fallthru
    _
  // Predicated region
  $region26: #{gae_forward.12} parent=0 // pred_check
    _
  $region27: #{gae_forward.12} parent=0 // pred_check_branch
    %730 = sbr.rel (0) target = $region29
  $region28: #{gae_forward.12} parent=0 // pred_region
    _
  $region29: #{gae_forward.12} parent=0 // pred_fallthru
    _

</llo_original>
